<compile_context>
chip_gen: v5e
topology: v5e:2x2
jax: 0.10.0
libtpu: 0.0.40
codegen_flags: <defaults>
</compile_context>

<pallas_src>
import functools

import jax
import jax.numpy as jnp
from jax.experimental import pallas as pl
from jax.experimental.pallas import tpu as pltpu

_VMEM_LIMIT = 48 * 1024 * 1024   # explicit scoped-VMEM budget (fits v5e/v6e/v7x)


# ---------------------------------------------------------------------------
# glue: phase-split of a zero-padded NHWC tensor so a stride-s conv only needs
# contiguous slices inside the kernel.
#   xp[n, ph*s+pw, a, b, c] == xpad[n, a*s+ph, b*s+pw, c]
# TODO(synk): replace with in-kernel strided reads (pl.ds(..., stride=s)) to
# drop this extra XLA transpose pass over each layer's activations.
# ---------------------------------------------------------------------------
def _phase_split(xpad, s, hps, wps):
    n, hp, wp, c = xpad.shape
    hneed, wneed = s * hps, s * wps
    pad_h, pad_w = max(0, hneed - hp), max(0, wneed - wp)
    if pad_h or pad_w:
        xpad = jnp.pad(xpad, ((0, 0), (0, pad_h), (0, pad_w), (0, 0)))
    xpad = xpad[:, :hneed, :wneed, :]
    xp = xpad.reshape(n, hps, s, wps, s, c).transpose(0, 2, 4, 1, 3, 5)
    return xp.reshape(n, s * s, hps, wps, c)


# ---------------------------------------------------------------------------
# Fused Conv2d(k=4) [+ InstanceNorm2d(affine=False)] [+ LeakyReLU(0.2)] kernel
# ---------------------------------------------------------------------------
def _conv_block_kernel(x_ref, w_ref, b_ref, o_ref,
                       conv_ref, sum_ref, sq_ref, *,
                       stride, kh, kw, h_out, w_out, tile_h, n_htiles,
                       use_norm, use_act, eps=1e-5, slope=0.2):
    s = stride
    t = pl.program_id(1)
    base = pl.multiple_of(t * tile_h, tile_h)

    @pl.when(t == 0)
    def _init():
        sum_ref[...] = jnp.zeros_like(sum_ref)
        sq_ref[...] = jnp.zeros_like(sq_ref)

    w2d = w_ref[...]                      # (kh*kw*Cin, Cout) bf16
    bias = b_ref[...]                     # (1, Cout) f32

    # im2col patch for tile_h output rows: (tile_h, Wout, kh*kw*Cin)
    slabs = []
    for ih in range(kh):
        for iw in range(kw):
            ph, oh = ih % s, ih // s
            pw, ow = iw % s, iw // s
            slabs.append(
                x_ref[0, ph * s + pw, pl.ds(base + oh, tile_h),
                      ow:ow + w_out, :])
    patch = jnp.concatenate(slabs, axis=-1)

    for r in range(tile_h):
        # one MXU matmul per output row with the full K = kh*kw*Cin contraction
        row = jnp.dot(patch[r], w2d, preferred_element_type=jnp.float32)
        if not use_norm:                  # InstanceNorm(affine=False) cancels bias
            row = row + bias
        if use_norm:
            # exclude padded rows (beyond h_out) from the statistics
            valid = ((base + r) < h_out).astype(jnp.float32)
            sum_ref[...] += valid * jnp.sum(row, axis=0, keepdims=True)
            sq_ref[...] += valid * jnp.sum(row * row, axis=0, keepdims=True)
        conv_ref[base + r] = row

    @pl.when(t == n_htiles - 1)
    def _finalize():
        y = conv_ref[0:h_out]             # (h_out, w_out, Cout) f32
        if use_norm:
            cnt = float(h_out * w_out)
            mean = sum_ref[...] / cnt                       # (1, Cout)
            var = jnp.maximum(sq_ref[...] / cnt - mean * mean, 0.0)
            y = (y - mean) * jax.lax.rsqrt(var + eps)
        if use_act:
            y = jnp.where(y >= 0, y, slope * y)
        o_ref[0] = y.astype(o_ref.dtype)  # single whole-sample store


def conv_block(x, w, b, *, stride, pad, use_norm, use_act):
    """x: (N, H, W, Cin) NHWC, w: (KH, KW, Cin, Cout), b: (Cout,)."""
    n, h, wd, cin = x.shape
    kh, kw, _, cout = w.shape
    s = stride
    h_out = (h + 2 * pad - kh) // s + 1
    w_out = (wd + 2 * pad - kw) // s + 1

    # H-tiling: <= 8 output rows per grid step.
    # TODO(synk): derive tile_h from pltpu.get_tpu_info() VMEM capacity and
    # switch InstanceNorm to a two-pass split at large resolutions (the whole
    # sample is kept resident here, which is fine at these shapes).
    n_htiles = pl.cdiv(h_out, 8)
    tile_h = pl.cdiv(h_out, n_htiles)
    n_htiles = pl.cdiv(h_out, tile_h)

    oh_max, ow_max = (kh - 1) // s, (kw - 1) // s
    hps = n_htiles * tile_h + oh_max
    wps = w_out + ow_max

    xpad = jnp.pad(x.astype(jnp.bfloat16),
                   ((0, 0), (pad, pad), (pad, pad), (0, 0)))
    xp = _phase_split(xpad, s, hps, wps)
    w2d = w.reshape(kh * kw * cin, cout).astype(jnp.bfloat16)
    b2d = b.reshape(1, cout).astype(jnp.float32)

    kernel = functools.partial(
        _conv_block_kernel, stride=s, kh=kh, kw=kw, h_out=h_out, w_out=w_out,
        tile_h=tile_h, n_htiles=n_htiles, use_norm=use_norm, use_act=use_act)

    return pl.pallas_call(
        kernel,
        out_shape=jax.ShapeDtypeStruct((n, h_out, w_out, cout), jnp.float32),
        grid=(n, n_htiles),
        in_specs=[
            pl.BlockSpec((1, s * s, hps, wps, cin),
                         lambda i, t: (i, 0, 0, 0, 0)),
            pl.BlockSpec((kh * kw * cin, cout), lambda i, t: (0, 0)),
            pl.BlockSpec((1, cout), lambda i, t: (0, 0)),
        ],
        out_specs=pl.BlockSpec((1, h_out, w_out, cout),
                               lambda i, t: (i, 0, 0, 0)),
        scratch_shapes=[
            pltpu.VMEM((n_htiles * tile_h, w_out, cout), jnp.float32),
            pltpu.VMEM((1, cout), jnp.float32),
            pltpu.VMEM((1, cout), jnp.float32),
        ],
        compiler_params=pltpu.CompilerParams(
            dimension_semantics=("parallel", "arbitrary"),
            vmem_limit_bytes=_VMEM_LIMIT),
    )(xp, w2d, b2d)


# ---------------------------------------------------------------------------
# AvgPool2d(3, stride=2, padding=1, count_include_pad=False)
# ---------------------------------------------------------------------------
def _avgpool_kernel(x_ref, inv_ref, o_ref, *, stride, k, h_out, w_out):
    s = stride
    c = x_ref.shape[-1]
    acc = jnp.zeros((h_out, w_out, c), jnp.float32)
    for ih in range(k):
        for iw in range(k):
            ph, oh = ih % s, ih // s
            pw, ow = iw % s, iw // s
            acc = acc + x_ref[0, ph * s + pw, oh:oh + h_out,
                              ow:ow + w_out, :].astype(jnp.float32)
    o_ref[0] = (acc * inv_ref[...]).astype(o_ref.dtype)


def avg_pool_3x3_s2(x):
    """x: (N, H, W, C) NHWC."""
    n, h, w, c = x.shape
    k, s, pad = 3, 2, 1
    h_out = (h + 2 * pad - k) // s + 1
    w_out = (w + 2 * pad - k) // s + 1
    hps, wps = h_out + (k - 1) // s, w_out + (k - 1) // s

    xpad = jnp.pad(x, ((0, 0), (pad, pad), (pad, pad), (0, 0)))
    xp = _phase_split(xpad, s, hps, wps)

    # count_include_pad=False divisor is position-only -> precompute 1/count.
    rr = s * jnp.arange(h_out)[:, None] + jnp.arange(k)[None, :] - pad
    cc = s * jnp.arange(w_out)[:, None] + jnp.arange(k)[None, :] - pad
    vh = jnp.sum((rr >= 0) & (rr < h), axis=1).astype(jnp.float32)
    vw = jnp.sum((cc >= 0) & (cc < w), axis=1).astype(jnp.float32)
    inv_cnt = (1.0 / (vh[:, None] * vw[None, :]))[..., None]   # (h_out,w_out,1)

    kernel = functools.partial(_avgpool_kernel, stride=s, k=k,
                               h_out=h_out, w_out=w_out)
    return pl.pallas_call(
        kernel,
        out_shape=jax.ShapeDtypeStruct((n, h_out, w_out, c), jnp.float32),
        grid=(n,),
        in_specs=[
            pl.BlockSpec((1, s * s, hps, wps, c), lambda i: (i, 0, 0, 0, 0)),
            pl.BlockSpec((h_out, w_out, 1), lambda i: (0, 0, 0)),
        ],
        out_specs=pl.BlockSpec((1, h_out, w_out, c), lambda i: (i, 0, 0, 0)),
        compiler_params=pltpu.CompilerParams(
            dimension_semantics=("parallel",),
            vmem_limit_bytes=_VMEM_LIMIT),
    )(xp, inv_cnt)


# ---------------------------------------------------------------------------
# Parameter construction / model application (plain-JAX glue)
# ---------------------------------------------------------------------------
def init_discriminator_params(key, input_nc, ndf, n_layers):
    """Matches NLayerDiscriminator.__init__ layer shapes (kw=4, padw=2)."""
    kw = 4
    specs = [(input_nc, ndf, 2, False)]           # (cin, cout, stride, use_norm)
    nf = ndf
    for _ in range(1, n_layers):
        nf_prev, nf = nf, min(nf * 2, 512)
        specs.append((nf_prev, nf, 2, True))
    nf_prev, nf = nf, min(nf * 2, 512)
    specs.append((nf_prev, nf, 1, True))
    specs.append((nf, 1, 1, False))               # final 1-channel conv

    params = []
    for (cin, cout, stride, use_norm) in specs:
        key, k1 = jax.random.split(key)
        w = 0.02 * jax.random.normal(k1, (kw, kw, cin, cout), jnp.float32)
        b = jnp.zeros((cout,), jnp.float32)
        params.append(dict(w=w, b=b, stride=stride, use_norm=use_norm))
    return params


def apply_discriminator(params, x_nhwc):
    n_total = len(params)
    x = x_nhwc
    for i, p in enumerate(params):
        last = (i == n_total - 1)
        x = conv_block(x, p["w"], p["b"], stride=p["stride"], pad=2,
                       use_norm=p["use_norm"], use_act=not last)
    return x


def multiscale_forward(all_params, x_nchw, num_D):
    """Mirrors MultiscaleDiscriminator.forward (getIntermFeat=False,
    use_sigmoid=False): list of [output] per scale, finest scale first."""
    # TODO(synk): getIntermFeat=True / use_sigmoid=True config branches are not
    # built; only the default forward path is implemented.
    x = jnp.transpose(x_nchw, (0, 2, 3, 1))       # NCHW -> NHWC
    results = []
    for i in range(num_D):
        params = all_params[num_D - 1 - i]        # layer{num_D-1-i}
        out = apply_discriminator(params, x)
        results.append([jnp.transpose(out, (0, 3, 1, 2))])   # back to NCHW
        if i != num_D - 1:
            x = avg_pool_3x3_s2(x)
    return results


if __name__ == "__main__":
    key = jax.random.PRNGKey(0)
    input_nc, ndf, n_layers, num_D = 3, 8, 3, 3
    N, H, W = 2, 16, 16

    key, kx = jax.random.split(key)
    x_nchw = jax.random.normal(kx, (N, input_nc, H, W), jnp.float32)

    all_params = []
    for _ in range(num_D):
        key, kd = jax.random.split(key)
        all_params.append(init_discriminator_params(kd, input_nc, ndf, n_layers))

    results = multiscale_forward(all_params, x_nchw, num_D)

    ok = True
    for scale_out in results:
        for t in scale_out:
            jax.block_until_ready(t)
            ok = ok and bool(jnp.all(jnp.isfinite(t)))

    if ok:
        print("KERNEL_OK")
</pallas_src>

<mosaic_0001>
module attributes {stable_mosaic.version = 11 : i64} {
  func.func @_conv_block_kernel(%arg0: i32, %arg1: i32, %arg2: memref<1x4x11x10x3xbf16, #tpu.memory_space<vmem>>, %arg3: memref<48x8xbf16, #tpu.memory_space<vmem>>, %arg4: memref<1x8xf32, #tpu.memory_space<vmem>>, %arg5: memref<1x9x9x8xf32, #tpu.memory_space<vmem>>, %arg6: memref<10x9x8xf32, #tpu.memory_space<vmem>>, %arg7: memref<1x8xf32, #tpu.memory_space<vmem>>, %arg8: memref<1x8xf32, #tpu.memory_space<vmem>>) attributes {dimension_semantics = [#tpu.dimension_semantics<parallel>, #tpu.dimension_semantics<arbitrary>], iteration_bounds = array<i64: 2, 2>, scalar_prefetch = 0 : i64, scratch_operands = 3 : i64, tpu.core_type = #tpu.core_type<tc>, window_params = [{transform_indices = @transform_0, window_bounds = array<i64: 1, 4, 11, 10, 3>}, {pipeline_mode = #tpu.pipeline_mode<synchronous>, transform_indices = @transform_1, window_bounds = array<i64: 48, 8>}, {pipeline_mode = #tpu.pipeline_mode<synchronous>, transform_indices = @transform_2, window_bounds = array<i64: 1, 8>}, {transform_indices = @transform_3, window_bounds = array<i64: 1, 9, 9, 8>}]} {
    %c5_i32 = arith.constant 5 : i32
    %0 = arith.muli %arg1, %c5_i32 : i32
    %1 = tpu.assume_multiple %0, 5 : i32
    %c0_i32 = arith.constant 0 : i32
    %2 = arith.cmpi eq, %arg1, %c0_i32 : i32
    %3 = arith.extui %2 : i1 to i32
    %c0_i32_0 = arith.constant 0 : i32
    %4 = arith.cmpi ne, %3, %c0_i32_0 : i32
    scf.if %4 {
      %cst_98 = arith.constant 0.000000e+00 : f32
      %125 = vector.broadcast %cst_98 : f32 to vector<1x8xf32>
      %c0_99 = arith.constant 0 : index
      %c0_100 = arith.constant 0 : index
      %126 = vector.load %arg7[%c0_99, %c0_100] : memref<1x8xf32, #tpu.memory_space<vmem>>, vector<1x8xf32>
      tpu.vector_store %arg7[%c0_99, %c0_100], %125 {strides = array<i32>} : memref<1x8xf32, #tpu.memory_space<vmem>>, vector<1x8xf32>,
      %cst_101 = arith.constant 0.000000e+00 : f32
      %127 = vector.broadcast %cst_101 : f32 to vector<1x8xf32>
      %c0_102 = arith.constant 0 : index
      %c0_103 = arith.constant 0 : index
      %128 = vector.load %arg8[%c0_102, %c0_103] : memref<1x8xf32, #tpu.memory_space<vmem>>, vector<1x8xf32>
      tpu.vector_store %arg8[%c0_102, %c0_103], %127 {strides = array<i32>} : memref<1x8xf32, #tpu.memory_space<vmem>>, vector<1x8xf32>,
    } else {
    }
    %c0 = arith.constant 0 : index
    %c0_1 = arith.constant 0 : index
    %5 = vector.load %arg3[%c0, %c0_1] : memref<48x8xbf16, #tpu.memory_space<vmem>>, vector<48x8xbf16>
    %c0_2 = arith.constant 0 : index
    %c0_3 = arith.constant 0 : index
    %6 = vector.load %arg4[%c0_2, %c0_3] : memref<1x8xf32, #tpu.memory_space<vmem>>, vector<1x8xf32>
    %c0_i32_4 = arith.constant 0 : i32
    %7 = arith.addi %1, %c0_i32_4 : i32
    %c0_5 = arith.constant 0 : index
    %c0_6 = arith.constant 0 : index
    %8 = arith.index_cast %7 : i32 to index
    %c0_7 = arith.constant 0 : index
    %c0_8 = arith.constant 0 : index
    %9 = vector.load %arg2[%c0_5, %c0_6, %8, %c0_7, %c0_8] : memref<1x4x11x10x3xbf16, #tpu.memory_space<vmem>>, vector<1x1x5x9x3xbf16>
    %10 = vector.shape_cast %9 : vector<1x1x5x9x3xbf16> to vector<5x9x3xbf16>
    %c0_i32_9 = arith.constant 0 : i32
    %11 = arith.addi %1, %c0_i32_9 : i32
    %c0_10 = arith.constant 0 : index
    %c1 = arith.constant 1 : index
    %12 = arith.index_cast %11 : i32 to index
    %c0_11 = arith.constant 0 : index
    %c0_12 = arith.constant 0 : index
    %13 = vector.load %arg2[%c0_10, %c1, %12, %c0_11, %c0_12] : memref<1x4x11x10x3xbf16, #tpu.memory_space<vmem>>, vector<1x1x5x9x3xbf16>
    %14 = vector.shape_cast %13 : vector<1x1x5x9x3xbf16> to vector<5x9x3xbf16>
    %c0_i32_13 = arith.constant 0 : i32
    %15 = arith.addi %1, %c0_i32_13 : i32
    %c0_14 = arith.constant 0 : index
    %c0_15 = arith.constant 0 : index
    %16 = arith.index_cast %15 : i32 to index
    %c1_16 = arith.constant 1 : index
    %c0_17 = arith.constant 0 : index
    %17 = vector.load %arg2[%c0_14, %c0_15, %16, %c1_16, %c0_17] : memref<1x4x11x10x3xbf16, #tpu.memory_space<vmem>>, vector<1x1x5x9x3xbf16>
    %18 = vector.shape_cast %17 : vector<1x1x5x9x3xbf16> to vector<5x9x3xbf16>
    %c0_i32_18 = arith.constant 0 : i32
    %19 = arith.addi %1, %c0_i32_18 : i32
    %c0_19 = arith.constant 0 : index
    %c1_20 = arith.constant 1 : index
    %20 = arith.index_cast %19 : i32 to index
    %c1_21 = arith.constant 1 : index
    %c0_22 = arith.constant 0 : index
    %21 = vector.load %arg2[%c0_19, %c1_20, %20, %c1_21, %c0_22] : memref<1x4x11x10x3xbf16, #tpu.memory_space<vmem>>, vector<1x1x5x9x3xbf16>
    %22 = vector.shape_cast %21 : vector<1x1x5x9x3xbf16> to vector<5x9x3xbf16>
    %c0_i32_23 = arith.constant 0 : i32
    %23 = arith.addi %1, %c0_i32_23 : i32
    %c0_24 = arith.constant 0 : index
    %c2 = arith.constant 2 : index
    %24 = arith.index_cast %23 : i32 to index
    %c0_25 = arith.constant 0 : index
    %c0_26 = arith.constant 0 : index
    %25 = vector.load %arg2[%c0_24, %c2, %24, %c0_25, %c0_26] : memref<1x4x11x10x3xbf16, #tpu.memory_space<vmem>>, vector<1x1x5x9x3xbf16>
    %26 = vector.shape_cast %25 : vector<1x1x5x9x3xbf16> to vector<5x9x3xbf16>
    %c0_i32_27 = arith.constant 0 : i32
    %27 = arith.addi %1, %c0_i32_27 : i32
    %c0_28 = arith.constant 0 : index
    %c3 = arith.constant 3 : index
    %28 = arith.index_cast %27 : i32 to index
    %c0_29 = arith.constant 0 : index
    %c0_30 = arith.constant 0 : index
    %29 = vector.load %arg2[%c0_28, %c3, %28, %c0_29, %c0_30] : memref<1x4x11x10x3xbf16, #tpu.memory_space<vmem>>, vector<1x1x5x9x3xbf16>
    %30 = vector.shape_cast %29 : vector<1x1x5x9x3xbf16> to vector<5x9x3xbf16>
    %c0_i32_31 = arith.constant 0 : i32
    %31 = arith.addi %1, %c0_i32_31 : i32
    %c0_32 = arith.constant 0 : index
    %c2_33 = arith.constant 2 : index
    %32 = arith.index_cast %31 : i32 to index
    %c1_34 = arith.constant 1 : index
    %c0_35 = arith.constant 0 : index
    %33 = vector.load %arg2[%c0_32, %c2_33, %32, %c1_34, %c0_35] : memref<1x4x11x10x3xbf16, #tpu.memory_space<vmem>>, vector<1x1x5x9x3xbf16>
    %34 = vector.shape_cast %33 : vector<1x1x5x9x3xbf16> to vector<5x9x3xbf16>
    %c0_i32_36 = arith.constant 0 : i32
    %35 = arith.addi %1, %c0_i32_36 : i32
    %c0_37 = arith.constant 0 : index
    %c3_38 = arith.constant 3 : index
    %36 = arith.index_cast %35 : i32 to index
    %c1_39 = arith.constant 1 : index
    %c0_40 = arith.constant 0 : index
    %37 = vector.load %arg2[%c0_37, %c3_38, %36, %c1_39, %c0_40] : memref<1x4x11x10x3xbf16, #tpu.memory_space<vmem>>, vector<1x1x5x9x3xbf16>
    %38 = vector.shape_cast %37 : vector<1x1x5x9x3xbf16> to vector<5x9x3xbf16>
    %c1_i32 = arith.constant 1 : i32
    %39 = arith.addi %1, %c1_i32 : i32
    %c0_41 = arith.constant 0 : index
    %c0_42 = arith.constant 0 : index
    %40 = arith.index_cast %39 : i32 to index
    %c0_43 = arith.constant 0 : index
    %c0_44 = arith.constant 0 : index
    %41 = vector.load %arg2[%c0_41, %c0_42, %40, %c0_43, %c0_44] : memref<1x4x11x10x3xbf16, #tpu.memory_space<vmem>>, vector<1x1x5x9x3xbf16>
    %42 = vector.shape_cast %41 : vector<1x1x5x9x3xbf16> to vector<5x9x3xbf16>
    %c1_i32_45 = arith.constant 1 : i32
    %43 = arith.addi %1, %c1_i32_45 : i32
    %c0_46 = arith.constant 0 : index
    %c1_47 = arith.constant 1 : index
    %44 = arith.index_cast %43 : i32 to index
    %c0_48 = arith.constant 0 : index
    %c0_49 = arith.constant 0 : index
    %45 = vector.load %arg2[%c0_46, %c1_47, %44, %c0_48, %c0_49] : memref<1x4x11x10x3xbf16, #tpu.memory_space<vmem>>, vector<1x1x5x9x3xbf16>
    %46 = vector.shape_cast %45 : vector<1x1x5x9x3xbf16> to vector<5x9x3xbf16>
    %c1_i32_50 = arith.constant 1 : i32
    %47 = arith.addi %1, %c1_i32_50 : i32
    %c0_51 = arith.constant 0 : index
    %c0_52 = arith.constant 0 : index
    %48 = arith.index_cast %47 : i32 to index
    %c1_53 = arith.constant 1 : index
    %c0_54 = arith.constant 0 : index
    %49 = vector.load %arg2[%c0_51, %c0_52, %48, %c1_53, %c0_54] : memref<1x4x11x10x3xbf16, #tpu.memory_space<vmem>>, vector<1x1x5x9x3xbf16>
    %50 = vector.shape_cast %49 : vector<1x1x5x9x3xbf16> to vector<5x9x3xbf16>
    %c1_i32_55 = arith.constant 1 : i32
    %51 = arith.addi %1, %c1_i32_55 : i32
    %c0_56 = arith.constant 0 : index
    %c1_57 = arith.constant 1 : index
    %52 = arith.index_cast %51 : i32 to index
    %c1_58 = arith.constant 1 : index
    %c0_59 = arith.constant 0 : index
    %53 = vector.load %arg2[%c0_56, %c1_57, %52, %c1_58, %c0_59] : memref<1x4x11x10x3xbf16, #tpu.memory_space<vmem>>, vector<1x1x5x9x3xbf16>
    %54 = vector.shape_cast %53 : vector<1x1x5x9x3xbf16> to vector<5x9x3xbf16>
    %c1_i32_60 = arith.constant 1 : i32
    %55 = arith.addi %1, %c1_i32_60 : i32
    %c0_61 = arith.constant 0 : index
    %c2_62 = arith.constant 2 : index
    %56 = arith.index_cast %55 : i32 to index
    %c0_63 = arith.constant 0 : index
    %c0_64 = arith.constant 0 : index
    %57 = vector.load %arg2[%c0_61, %c2_62, %56, %c0_63, %c0_64] : memref<1x4x11x10x3xbf16, #tpu.memory_space<vmem>>, vector<1x1x5x9x3xbf16>
    %58 = vector.shape_cast %57 : vector<1x1x5x9x3xbf16> to vector<5x9x3xbf16>
    %c1_i32_65 = arith.constant 1 : i32
    %59 = arith.addi %1, %c1_i32_65 : i32
    %c0_66 = arith.constant 0 : index
    %c3_67 = arith.constant 3 : index
    %60 = arith.index_cast %59 : i32 to index
    %c0_68 = arith.constant 0 : index
    %c0_69 = arith.constant 0 : index
    %61 = vector.load %arg2[%c0_66, %c3_67, %60, %c0_68, %c0_69] : memref<1x4x11x10x3xbf16, #tpu.memory_space<vmem>>, vector<1x1x5x9x3xbf16>
    %62 = vector.shape_cast %61 : vector<1x1x5x9x3xbf16> to vector<5x9x3xbf16>
    %c1_i32_70 = arith.constant 1 : i32
    %63 = arith.addi %1, %c1_i32_70 : i32
    %c0_71 = arith.constant 0 : index
    %c2_72 = arith.constant 2 : index
    %64 = arith.index_cast %63 : i32 to index
    %c1_73 = arith.constant 1 : index
    %c0_74 = arith.constant 0 : index
    %65 = vector.load %arg2[%c0_71, %c2_72, %64, %c1_73, %c0_74] : memref<1x4x11x10x3xbf16, #tpu.memory_space<vmem>>, vector<1x1x5x9x3xbf16>
    %66 = vector.shape_cast %65 : vector<1x1x5x9x3xbf16> to vector<5x9x3xbf16>
    %c1_i32_75 = arith.constant 1 : i32
    %67 = arith.addi %1, %c1_i32_75 : i32
    %c0_76 = arith.constant 0 : index
    %c3_77 = arith.constant 3 : index
    %68 = arith.index_cast %67 : i32 to index
    %c1_78 = arith.constant 1 : index
    %c0_79 = arith.constant 0 : index
    %69 = vector.load %arg2[%c0_76, %c3_77, %68, %c1_78, %c0_79] : memref<1x4x11x10x3xbf16, #tpu.memory_space<vmem>>, vector<1x1x5x9x3xbf16>
    %70 = vector.shape_cast %69 : vector<1x1x5x9x3xbf16> to vector<5x9x3xbf16>
    %71 = tpu.concatenate %10, %14, %18, %22, %26, %30, %34, %38, %42, %46, %50, %54, %58, %62, %66, %70 in 2 : vector<5x9x3xbf16>, vector<5x9x3xbf16>, vector<5x9x3xbf16>, vector<5x9x3xbf16>, vector<5x9x3xbf16>, vector<5x9x3xbf16>, vector<5x9x3xbf16>, vector<5x9x3xbf16>, vector<5x9x3xbf16>, vector<5x9x3xbf16>, vector<5x9x3xbf16>, vector<5x9x3xbf16>, vector<5x9x3xbf16>, vector<5x9x3xbf16>, vector<5x9x3xbf16>, vector<5x9x3xbf16> -> vector<5x9x48xbf16>
    %72 = vector.extract_strided_slice %71 {offsets = [0, 0, 0], sizes = [1, 9, 48], strides = [1, 1, 1]} : vector<5x9x48xbf16> to vector<1x9x48xbf16>
    %73 = vector.shape_cast %72 : vector<1x9x48xbf16> to vector<9x48xbf16>
    %cst = arith.constant dense<0.000000e+00> : vector<9x8xf32>
    %74 = tpu.matmul %73, %5, %cst {dimension_numbers = #tpu.dot_dimension_numbers<[1], [0], [0], [1], [0, 0, 1, 1], [], []>} : vector<9x48xbf16>, vector<48x8xbf16>, vector<9x8xf32> -> vector<9x8xf32>
    %75 = vector.broadcast %6 : vector<1x8xf32> to vector<9x8xf32>
    %76 = arith.addf %74, %75 : vector<9x8xf32>
    %c0_i32_80 = arith.constant 0 : i32
    %77 = arith.addi %1, %c0_i32_80 : i32
    %78 = arith.index_cast %77 : i32 to index
    %c0_81 = arith.constant 0 : index
    %c0_82 = arith.constant 0 : index
    %79 = vector.load %arg6[%78, %c0_81, %c0_82] : memref<10x9x8xf32, #tpu.memory_space<vmem>>, vector<1x9x8xf32>
    %80 = vector.shape_cast %79 : vector<1x9x8xf32> to vector<9x8xf32>
    %81 = vector.shape_cast %76 : vector<9x8xf32> to vector<1x9x8xf32>
    tpu.vector_store %arg6[%78, %c0_81, %c0_82], %81 {strides = array<i32>} : memref<10x9x8xf32, #tpu.memory_space<vmem>>, vector<1x9x8xf32>,
    %82 = vector.extract_strided_slice %71 {offsets = [1, 0, 0], sizes = [1, 9, 48], strides = [1, 1, 1]} : vector<5x9x48xbf16> to vector<1x9x48xbf16>
    %83 = vector.shape_cast %82 : vector<1x9x48xbf16> to vector<9x48xbf16>
    %cst_83 = arith.constant dense<0.000000e+00> : vector<9x8xf32>
    %84 = tpu.matmul %83, %5, %cst_83 {dimension_numbers = #tpu.dot_dimension_numbers<[1], [0], [0], [1], [0, 0, 1, 1], [], []>} : vector<9x48xbf16>, vector<48x8xbf16>, vector<9x8xf32> -> vector<9x8xf32>
    %85 = vector.broadcast %6 : vector<1x8xf32> to vector<9x8xf32>
    %86 = arith.addf %84, %85 : vector<9x8xf32>
    %c1_i32_84 = arith.constant 1 : i32
    %87 = arith.addi %1, %c1_i32_84 : i32
    %88 = arith.index_cast %87 : i32 to index
    %c0_85 = arith.constant 0 : index
    %c0_86 = arith.constant 0 : index
    %89 = vector.load %arg6[%88, %c0_85, %c0_86] : memref<10x9x8xf32, #tpu.memory_space<vmem>>, vector<1x9x8xf32>
    %90 = vector.shape_cast %89 : vector<1x9x8xf32> to vector<9x8xf32>
    %91 = vector.shape_cast %86 : vector<9x8xf32> to vector<1x9x8xf32>
    tpu.vector_store %arg6[%88, %c0_85, %c0_86], %91 {strides = array<i32>} : memref<10x9x8xf32, #tpu.memory_space<vmem>>, vector<1x9x8xf32>,
    %92 = vector.extract_strided_slice %71 {offsets = [2, 0, 0], sizes = [1, 9, 48], strides = [1, 1, 1]} : vector<5x9x48xbf16> to vector<1x9x48xbf16>
    %93 = vector.shape_cast %92 : vector<1x9x48xbf16> to vector<9x48xbf16>
    %cst_87 = arith.constant dense<0.000000e+00> : vector<9x8xf32>
    %94 = tpu.matmul %93, %5, %cst_87 {dimension_numbers = #tpu.dot_dimension_numbers<[1], [0], [0], [1], [0, 0, 1, 1], [], []>} : vector<9x48xbf16>, vector<48x8xbf16>, vector<9x8xf32> -> vector<9x8xf32>
    %95 = vector.broadcast %6 : vector<1x8xf32> to vector<9x8xf32>
    %96 = arith.addf %94, %95 : vector<9x8xf32>
    %c2_i32 = arith.constant 2 : i32
    %97 = arith.addi %1, %c2_i32 : i32
    %98 = arith.index_cast %97 : i32 to index
    %c0_88 = arith.constant 0 : index
    %c0_89 = arith.constant 0 : index
    %99 = vector.load %arg6[%98, %c0_88, %c0_89] : memref<10x9x8xf32, #tpu.memory_space<vmem>>, vector<1x9x8xf32>
    %100 = vector.shape_cast %99 : vector<1x9x8xf32> to vector<9x8xf32>
    %101 = vector.shape_cast %96 : vector<9x8xf32> to vector<1x9x8xf32>
    tpu.vector_store %arg6[%98, %c0_88, %c0_89], %101 {strides = array<i32>} : memref<10x9x8xf32, #tpu.memory_space<vmem>>, vector<1x9x8xf32>,
    %102 = vector.extract_strided_slice %71 {offsets = [3, 0, 0], sizes = [1, 9, 48], strides = [1, 1, 1]} : vector<5x9x48xbf16> to vector<1x9x48xbf16>
    %103 = vector.shape_cast %102 : vector<1x9x48xbf16> to vector<9x48xbf16>
    %cst_90 = arith.constant dense<0.000000e+00> : vector<9x8xf32>
    %104 = tpu.matmul %103, %5, %cst_90 {dimension_numbers = #tpu.dot_dimension_numbers<[1], [0], [0], [1], [0, 0, 1, 1], [], []>} : vector<9x48xbf16>, vector<48x8xbf16>, vector<9x8xf32> -> vector<9x8xf32>
    %105 = vector.broadcast %6 : vector<1x8xf32> to vector<9x8xf32>
    %106 = arith.addf %104, %105 : vector<9x8xf32>
    %c3_i32 = arith.constant 3 : i32
    %107 = arith.addi %1, %c3_i32 : i32
    %108 = arith.index_cast %107 : i32 to index
    %c0_91 = arith.constant 0 : index
    %c0_92 = arith.constant 0 : index
    %109 = vector.load %arg6[%108, %c0_91, %c0_92] : memref<10x9x8xf32, #tpu.memory_space<vmem>>, vector<1x9x8xf32>
    %110 = vector.shape_cast %109 : vector<1x9x8xf32> to vector<9x8xf32>
    %111 = vector.shape_cast %106 : vector<9x8xf32> to vector<1x9x8xf32>
    tpu.vector_store %arg6[%108, %c0_91, %c0_92], %111 {strides = array<i32>} : memref<10x9x8xf32, #tpu.memory_space<vmem>>, vector<1x9x8xf32>,
    %112 = vector.extract_strided_slice %71 {offsets = [4, 0, 0], sizes = [1, 9, 48], strides = [1, 1, 1]} : vector<5x9x48xbf16> to vector<1x9x48xbf16>
    %113 = vector.shape_cast %112 : vector<1x9x48xbf16> to vector<9x48xbf16>
    %cst_93 = arith.constant dense<0.000000e+00> : vector<9x8xf32>
    %114 = tpu.matmul %113, %5, %cst_93 {dimension_numbers = #tpu.dot_dimension_numbers<[1], [0], [0], [1], [0, 0, 1, 1], [], []>} : vector<9x48xbf16>, vector<48x8xbf16>, vector<9x8xf32> -> vector<9x8xf32>
    %115 = vector.broadcast %6 : vector<1x8xf32> to vector<9x8xf32>
    %116 = arith.addf %114, %115 : vector<9x8xf32>
    %c4_i32 = arith.constant 4 : i32
    %117 = arith.addi %1, %c4_i32 : i32
    %118 = arith.index_cast %117 : i32 to index
    %c0_94 = arith.constant 0 : index
    %c0_95 = arith.constant 0 : index
    %119 = vector.load %arg6[%118, %c0_94, %c0_95] : memref<10x9x8xf32, #tpu.memory_space<vmem>>, vector<1x9x8xf32>
    %120 = vector.shape_cast %119 : vector<1x9x8xf32> to vector<9x8xf32>
    %121 = vector.shape_cast %116 : vector<9x8xf32> to vector<1x9x8xf32>
    tpu.vector_store %arg6[%118, %c0_94, %c0_95], %121 {strides = array<i32>} : memref<10x9x8xf32, #tpu.memory_space<vmem>>, vector<1x9x8xf32>,
    %c1_i32_96 = arith.constant 1 : i32
    %122 = arith.cmpi eq, %arg1, %c1_i32_96 : i32
    %123 = arith.extui %122 : i1 to i32
    %c0_i32_97 = arith.constant 0 : i32
    %124 = arith.cmpi ne, %123, %c0_i32_97 : i32
    scf.if %124 {
      %c0_98 = arith.constant 0 : index
      %c0_99 = arith.constant 0 : index
      %c0_100 = arith.constant 0 : index
      %125 = vector.load %arg6[%c0_98, %c0_99, %c0_100] : memref<10x9x8xf32, #tpu.memory_space<vmem>>, vector<9x9x8xf32>
      %cst_101 = arith.constant 0.000000e+00 : f32
      %126 = vector.broadcast %cst_101 : f32 to vector<9x9x8xf32>
      %127 = arith.cmpf oge, %125, %126 : vector<9x9x8xf32>
      %cst_102 = arith.constant 2.000000e-01 : f32
      %128 = vector.broadcast %cst_102 : f32 to vector<9x9x8xf32>
      %129 = arith.mulf %128, %125 : vector<9x9x8xf32>
      %130 = arith.select %127, %125, %129 : vector<9x9x8xi1>, vector<9x9x8xf32>
      %c0_103 = arith.constant 0 : index
      %c0_104 = arith.constant 0 : index
      %c0_105 = arith.constant 0 : index
      %c0_106 = arith.constant 0 : index
      %131 = vector.load %arg5[%c0_103, %c0_104, %c0_105, %c0_106] : memref<1x9x9x8xf32, #tpu.memory_space<vmem>>, vector<1x9x9x8xf32>
      %132 = vector.shape_cast %131 : vector<1x9x9x8xf32> to vector<9x9x8xf32>
      %133 = vector.shape_cast %130 : vector<9x9x8xf32> to vector<1x9x9x8xf32>
      tpu.vector_store %arg5[%c0_103, %c0_104, %c0_105, %c0_106], %133 {strides = array<i32>} : memref<1x9x9x8xf32, #tpu.memory_space<vmem>>, vector<1x9x9x8xf32>,
    } else {
    }
    return
  }
  func.func @transform_0(%arg0: i32, %arg1: i32) -> (i32, i32, i32, i32, i32) {
    %c0_i32 = arith.constant 0 : i32
    %c0_i32_0 = arith.constant 0 : i32
    %c0_i32_1 = arith.constant 0 : i32
    %c0_i32_2 = arith.constant 0 : i32
    %c0_i32_3 = arith.constant 0 : i32
    return %arg0, %c0_i32, %c0_i32_0, %c0_i32_1, %c0_i32_2 : i32, i32, i32, i32, i32
  }
  func.func @transform_1(%arg0: i32, %arg1: i32) -> (i32, i32) {
    %c0_i32 = arith.constant 0 : i32
    %c0_i32_0 = arith.constant 0 : i32
    %c0_i32_1 = arith.constant 0 : i32
    return %c0_i32, %c0_i32_0 : i32, i32
  }
  func.func @transform_2(%arg0: i32, %arg1: i32) -> (i32, i32) {
    %c0_i32 = arith.constant 0 : i32
    %c0_i32_0 = arith.constant 0 : i32
    %c0_i32_1 = arith.constant 0 : i32
    return %c0_i32, %c0_i32_0 : i32, i32
  }
  func.func @transform_3(%arg0: i32, %arg1: i32) -> (i32, i32, i32, i32) {
    %c0_i32 = arith.constant 0 : i32
    %c0_i32_0 = arith.constant 0 : i32
    %c0_i32_1 = arith.constant 0 : i32
    %c0_i32_2 = arith.constant 0 : i32
    return %arg0, %c0_i32, %c0_i32_0, %c0_i32_1 : i32, i32, i32, i32
  }
}

</mosaic_0001>

<llo_original>
// kernel: tpu_custom_call.1
$region0: #{tpu_custom_call.1}
  #allocation0 [shape = 'u32[]', space=smem, size = 0x4, offset = 0x4, fixed_abs, tag = 'smem constant byte address 0x4 - core index']
  #allocation1 [shape = 'u32[72,128]{1,0:T(1,128)}', space=vmem, size = 0x9000, scoped, tag = 'internal scratch']
  #allocation2 [shape = 'f32[10,9,8]{2,1,0:T(8,128)}', space=vmem, size = 0x14000, scoped, tag = 'scratch operand']
  #allocation3 [shape = 'f32[1,8]{1,0:T(1,128)}', space=vmem, size = 0x200, scoped, tag = 'scratch operand']
  #allocation4 [shape = 'f32[1,8]{1,0:T(1,128)}', space=vmem, size = 0x200, scoped, tag = 'scratch operand']
  %s0 = inlined_call_operand.vmem [shape: bf16[2,4,11,10,3], index: 0, kind: input, shape index: {}]
  %s1 = inlined_call_operand.vmem [shape: bf16[48,8], index: 1, kind: input, shape index: {}]
  %s2 = inlined_call_operand.vmem [shape: f32[1,8], index: 2, kind: input, shape index: {}]
  %s3 = inlined_call_operand.vmem [shape: f32[2,9,9,8], index: 3, kind: output, shape index: {}]
  %s4 = sld [smem:[#allocation0]]
  $region53: #{tpu_custom_call.1} parent=0
    _
  %s6 = ssub.s32 1, %s4
  %s7 = scalar_select 0, %s6, %s4
  loop: start=0, step=1, limit=6
  $region2: #{tpu_custom_call.1} parent=0 // loop_pre_header
    _
  $region3: #{tpu_custom_call.1} parent=0 // loop_header
    %s9 = sphi 0, %s13
    %p10 = scmp.ge.s32.totalorder %s9, 6
    %s16 = sphi 0, %s28
    %s17 = sphi 0, %s24
    %s18 = sphi 0, %s16
    %s19 = sphi 0, %s17
    %s20 = sphi 0, %s18
    %s21 = sphi 0, %s19
    %s31 = sphi 0, %s33
    %s34 = sphi 0, %s31
    %s35 = sphi 0, %s34
    %s51 = sphi 0, %s35
    %s55 = sphi 0, %s55
    %s57 = sphi 0, %s55
    %s58 = sphi 0, %s57
    %s72 = sphi 0, %s58
    %s76 = sphi 0, %s76
    %s78 = sphi 0, %s76
    %s79 = sphi 0, %s78
    %s93 = sphi 0, %s79
    %s99 = sphi 0, %s101
    %s102 = sphi 0, %s99
    %s103 = sphi 0, %s102
    %s119 = sphi 0, %s103
  $region4: #{tpu_custom_call.1} parent=0 // loop_header_branch
    %12 = sbr.rel (%p10) target = $region8
  $region5: #{tpu_custom_call.1} parent=0 // loop_body
    %s14 = ssub.s32 %s9, 1
    %s15 = ssub.s32 %s9, 2
    %s22 = sadd.s32 1, %s17
    %p23 = scmp.ge.s32.totalorder %s22, 2
    %s24 = scalar_select %p23, 0, %s22
    %s25 = sadd.s32 1, %s16
    %s26 = scalar_select %p23, %s25, %s16
    %p27 = scmp.ge.s32.totalorder %s26, 2
    %s28 = scalar_select %p27, 0, %s26
    %s29 = ssub.s32 %s16, %s28
    %p30 = scmp.eq.s32.totalorder %s29, 0
    %s32 = sadd.s32 %s31, 1
    %s33 = scalar_select %p30, %s31, %s32
    %p36 = pneg %p30
    %p37 = scmp.eq.s32.totalorder %s9, 3
    %p38 = por %p36, %p37
    %p39 = scmp.ne.s32.totalorder %s31, %s34
    %p40 = scmp.eq.s32.totalorder %s9, 0
    %p41 = por %p39, %p40
    %p42 = scmp.ne.s32.totalorder %s31, %s34
    %p43 = scmp.eq.s32.totalorder %s14, 3
    %p44 = por %p42, %p43
    %p45 = scmp.ne.s32.totalorder %s34, %s35
    %p46 = scmp.eq.s32.totalorder %s14, 0
    %p47 = por %p45, %p46
    %p48 = scmp.ne.s32.totalorder %s34, %s35
    %p49 = scmp.eq.s32.totalorder %s15, 3
    %p50 = por %p48, %p49
    %p52 = scmp.ne.s32.totalorder %s35, %s51
    %p53 = scmp.eq.s32.totalorder %s15, 0
    %p54 = por %p52, %p53
    %s56 = sadd.s32 %s55, 1
    %p59 = scmp.eq.s32.totalorder %s9, 3
    %p60 = scmp.ne.s32.totalorder %s55, %s57
    %p61 = scmp.eq.s32.totalorder %s9, 0
    %p62 = por %p60, %p61
    %p63 = scmp.ne.s32.totalorder %s55, %s57
    %p64 = scmp.eq.s32.totalorder %s14, 3
    %p65 = por %p63, %p64
    %p66 = scmp.ne.s32.totalorder %s57, %s58
    %p67 = scmp.eq.s32.totalorder %s14, 0
    %p68 = por %p66, %p67
    %p69 = scmp.ne.s32.totalorder %s57, %s58
    %p70 = scmp.eq.s32.totalorder %s15, 3
    %p71 = por %p69, %p70
    %p73 = scmp.ne.s32.totalorder %s58, %s72
    %p74 = scmp.eq.s32.totalorder %s15, 0
    %p75 = por %p73, %p74
    %s77 = sadd.s32 %s76, 1
    %p80 = scmp.eq.s32.totalorder %s9, 3
    %p81 = scmp.ne.s32.totalorder %s76, %s78
    %p82 = scmp.eq.s32.totalorder %s9, 0
    %p83 = por %p81, %p82
    %p84 = scmp.ne.s32.totalorder %s76, %s78
    %p85 = scmp.eq.s32.totalorder %s14, 3
    %p86 = por %p84, %p85
    %p87 = scmp.ne.s32.totalorder %s78, %s79
    %p88 = scmp.eq.s32.totalorder %s14, 0
    %p89 = por %p87, %p88
    %p90 = scmp.ne.s32.totalorder %s78, %s79
    %p91 = scmp.eq.s32.totalorder %s15, 3
    %p92 = por %p90, %p91
    %p94 = scmp.ne.s32.totalorder %s79, %s93
    %p95 = scmp.eq.s32.totalorder %s15, 0
    %p96 = por %p94, %p95
    %s97 = ssub.s32 %s16, %s28
    %p98 = scmp.eq.s32.totalorder %s97, 0
    %s100 = sadd.s32 %s99, 1
    %s101 = scalar_select %p98, %s99, %s100
    %p104 = pneg %p98
    %p105 = scmp.eq.s32.totalorder %s9, 3
    %p106 = por %p104, %p105
    %p107 = scmp.ne.s32.totalorder %s99, %s102
    %p108 = scmp.eq.s32.totalorder %s9, 0
    %p109 = por %p107, %p108
    %p110 = scmp.ne.s32.totalorder %s99, %s102
    %p111 = scmp.eq.s32.totalorder %s14, 3
    %p112 = por %p110, %p111
    %p113 = scmp.ne.s32.totalorder %s102, %s103
    %p114 = scmp.eq.s32.totalorder %s14, 0
    %p115 = por %p113, %p114
    %p116 = scmp.ne.s32.totalorder %s102, %s103
    %p117 = scmp.eq.s32.totalorder %s15, 3
    %p118 = por %p116, %p117
    %p120 = scmp.ne.s32.totalorder %s103, %s119
    %p121 = scmp.eq.s32.totalorder %s15, 0
    %p122 = por %p120, %p121
    %p123 = scmp.le.s32.totalorder 1, %s9
    %p124 = scmp.lt.s32.totalorder %s9, 5
    %p125 = pnand %p123, %p124
    %p126 = pneg %p125
    // Predicated region
    $region9: #{tpu_custom_call.1} parent=5 // pred_check
      _
    $region10: #{tpu_custom_call.1} parent=5 // pred_check_branch
      %128 = sbr.rel (%p125) target = $region12
    $region11: #{tpu_custom_call.1} parent=5 // pred_region
      %s129 = ssub.s32 %s9, 1
      // Predicated region
      $region13: #{tpu_custom_call.1} parent=11 // pred_check
        %p130 = pneg %p68
      $region14: #{tpu_custom_call.1} parent=11 // pred_check_branch
        %132 = sbr.rel (%p130) target = $region16
      $region15: #{tpu_custom_call.1} parent=11 // pred_region
        _
      $region16: #{tpu_custom_call.1} parent=11 // pred_fallthru
        _
      // Predicated region
      $region17: #{tpu_custom_call.1} parent=11 // pred_check
        %p133 = pneg %p89
      $region18: #{tpu_custom_call.1} parent=11 // pred_check_branch
        %135 = sbr.rel (%p133) target = $region20
      $region19: #{tpu_custom_call.1} parent=11 // pred_region
        _
      $region20: #{tpu_custom_call.1} parent=11 // pred_fallthru
        _
    $region12: #{tpu_custom_call.1} parent=5 // pred_fallthru
      _
    %p136 = scmp.lt.s32.totalorder %s9, 4
    // Predicated region
    $region21: #{tpu_custom_call.1} parent=5 // pred_check
      %p137 = pneg %p136
    $region22: #{tpu_custom_call.1} parent=5 // pred_check_branch
      %139 = sbr.rel (%p137) target = $region24
    $region23: #{tpu_custom_call.1} parent=5 // pred_region
      // Predicated region
      $region25: #{tpu_custom_call.1} parent=23 // pred_check
        %p140 = pneg %p41
      $region26: #{tpu_custom_call.1} parent=23 // pred_check_branch
        %142 = sbr.rel (%p140) target = $region28
      $region27: #{tpu_custom_call.1} parent=23 // pred_region
        %p143 = scmp.lt.s32.totalorder %s16, 1
        %s144 = scalar_select %p143, %s16, 1
        %s145 = smul.addr %s144, 88
        %s146 = smul.addr %s145, 4
        %s147 = scalar_lea.vmem %s0, %s146
      $region28: #{tpu_custom_call.1} parent=23 // pred_fallthru
        _
    $region24: #{tpu_custom_call.1} parent=5 // pred_fallthru
      _
    %p148 = scmp.le.s32.totalorder 1, %s9
    %p149 = scmp.lt.s32.totalorder %s9, 5
    %p150 = pnand %p148, %p149
    %p151 = pneg %p150
    // Predicated region
    $region29: #{tpu_custom_call.1} parent=5 // pred_check
      _
    $region30: #{tpu_custom_call.1} parent=5 // pred_check_branch
      %153 = sbr.rel (%p150) target = $region32
    $region31: #{tpu_custom_call.1} parent=5 // pred_region
      %s154 = ssub.s32 %s9, 1
      %p155 = scmp.lt.s32.totalorder %s18, 1
      %s156 = scalar_select %p155, %s18, 1
      %s157 = smul.addr %s156, 88
      %s158 = smul.addr %s157, 4
      %s159 = scalar_lea.vmem %s0, %s158
      %p160 = pneg %p47
      %p161 = pneg %p44
      %p162 = pneg %p68
      %p163 = pneg %p65
      %p164 = pneg %p89
      %p165 = pneg %p86
      %p166 = pneg %p115
      %p167 = pneg %p112
      %p168 = scmp.lt.s32.totalorder %s18, 1
      %s169 = scalar_select %p168, %s18, 1
      %s170 = smul.addr %s169, 18
      %s171 = smul.addr %s170, 8
      %s172 = scalar_lea.vmem %s3, %s171
      %p173 = scmp.lt.s32.totalorder %s18, 1
      %s174 = scalar_select %p173, %s18, 1
      %s175 = smul.addr %s174, 88
      %s176 = smul.addr %s175, 4
      %s177 = scalar_lea.vmem %s0, %s176
      %p178 = scmp.lt.s32.totalorder %s18, 1
      %s179 = scalar_select %p178, %s18, 1
      %s180 = smul.addr %s179, 18
      %s181 = smul.addr %s180, 8
      %s182 = scalar_lea.vmem %s3, %s181
      %s184 = smul.u32 %s19, 5
      %p185 = scmp.eq.s32.totalorder %s19, 0
      // Predicated region
      $region33: #{tpu_custom_call.1} parent=31 // pred_check
        %p186 = pneg %p185
      $region34: #{tpu_custom_call.1} parent=31 // pred_check_branch
        %188 = sbr.rel (%p186) target = $region36
      $region35: #{tpu_custom_call.1} parent=31 // pred_region
        %vm189 = vcmask 57344
        %190 = vst.msk [vmem:[#allocation3] sm:$0x1] %vm189, 0.0
        %191 = vst.msk [vmem:[#allocation4] sm:$0x1] %vm189, 0.0
      $region36: #{tpu_custom_call.1} parent=31 // pred_fallthru
        _
      %v192 = vld [vmem:[%s1] sm:$0xf]
      %v193 = vld [vmem:[%s1 + $0x4] sm:$0xf]
      %v194 = vld [vmem:[%s1 + $0x8] sm:$0xf]
      %v195 = vld [vmem:[%s1 + $0xc] sm:$0xf]
      %v196 = vld [vmem:[%s1 + $0x10] sm:$0xf]
      %v197 = vld [vmem:[%s1 + $0x14] sm:$0xf]
      %v198 = vld [vmem:[%s2] sm:$0x1]
      %s199 = smul.u32 %s184, 2
      %s200 = smul.addr %s199, 4
      %s201 = scalar_lea.vmem %s177, %s200
      %v202 = vld [vmem:[%s201] sm:$0xf]
      %v203 = vld [vmem:[%s201 + $0x4] sm:$0x1]
      %v204 = vld [vmem:[%s201 + $0x8] sm:$0xf]
      %v205 = vld [vmem:[%s201 + $0xc] sm:$0x1]
      %v206 = vld [vmem:[%s201 + $0x10] sm:$0xf]
      %v207 = vld [vmem:[%s201 + $0x14] sm:$0x1]
      %v208 = vld [vmem:[%s201 + $0x18] sm:$0xf]
      %v209 = vld [vmem:[%s201 + $0x1c] sm:$0x1]
      %v210 = vld [vmem:[%s201 + $0x20] sm:$0xf]
      %v211 = vld [vmem:[%s201 + $0x24] sm:$0x1]
      %s212 = sadd.s32 %s199, 22
      %s213 = smul.addr %s212, 4
      %s214 = scalar_lea.vmem %s177, %s213
      %v215 = vld [vmem:[%s214] sm:$0xf]
      %v216 = vld [vmem:[%s214 + $0x4] sm:$0x1]
      %v217 = vld [vmem:[%s214 + $0x8] sm:$0xf]
      %v218 = vld [vmem:[%s214 + $0xc] sm:$0x1]
      %v219 = vld [vmem:[%s214 + $0x10] sm:$0xf]
      %v220 = vld [vmem:[%s214 + $0x14] sm:$0x1]
      %v221 = vld [vmem:[%s214 + $0x18] sm:$0xf]
      %v222 = vld [vmem:[%s214 + $0x1c] sm:$0x1]
      %v223 = vld [vmem:[%s214 + $0x20] sm:$0xf]
      %v224 = vld [vmem:[%s214 + $0x24] sm:$0x1]
      %s225 = sadd.s32 %s199, 44
      %s226 = smul.addr %s225, 4
      %s227 = scalar_lea.vmem %s177, %s226
      %v228 = vld [vmem:[%s227] sm:$0xf]
      %v229 = vld [vmem:[%s227 + $0x4] sm:$0x1]
      %v230 = vld [vmem:[%s227 + $0x8] sm:$0xf]
      %v231 = vld [vmem:[%s227 + $0xc] sm:$0x1]
      %v232 = vld [vmem:[%s227 + $0x10] sm:$0xf]
      %v233 = vld [vmem:[%s227 + $0x14] sm:$0x1]
      %v234 = vld [vmem:[%s227 + $0x18] sm:$0xf]
      %v235 = vld [vmem:[%s227 + $0x1c] sm:$0x1]
      %v236 = vld [vmem:[%s227 + $0x20] sm:$0xf]
      %v237 = vld [vmem:[%s227 + $0x24] sm:$0x1]
      %s238 = sadd.s32 %s199, 66
      %s239 = smul.addr %s238, 4
      %s240 = scalar_lea.vmem %s177, %s239
      %v241 = vld [vmem:[%s240] sm:$0xf]
      %v242 = vld [vmem:[%s240 + $0x4] sm:$0x1]
      %v243 = vld [vmem:[%s240 + $0x8] sm:$0xf]
      %v244 = vld [vmem:[%s240 + $0xc] sm:$0x1]
      %v245 = vld [vmem:[%s240 + $0x10] sm:$0xf]
      %v246 = vld [vmem:[%s240 + $0x14] sm:$0x1]
      %v247 = vld [vmem:[%s240 + $0x18] sm:$0xf]
      %v248 = vld [vmem:[%s240 + $0x1c] sm:$0x1]
      %v249 = vld [vmem:[%s240 + $0x20] sm:$0xf]
      %v250 = vld [vmem:[%s240 + $0x24] sm:$0x1]
      %s251 = sadd.s32 %s184, 1
      %s252 = smul.u32 %s251, 2
      %s253 = smul.addr %s252, 4
      %s254 = scalar_lea.vmem %s177, %s253
      %v255 = vld [vmem:[%s254] sm:$0xf]
      %v256 = vld [vmem:[%s254 + $0x4] sm:$0x1]
      %v257 = vld [vmem:[%s254 + $0x8] sm:$0xf]
      %v258 = vld [vmem:[%s254 + $0xc] sm:$0x1]
      %v259 = vld [vmem:[%s254 + $0x10] sm:$0xf]
      %v260 = vld [vmem:[%s254 + $0x14] sm:$0x1]
      %v261 = vld [vmem:[%s254 + $0x18] sm:$0xf]
      %v262 = vld [vmem:[%s254 + $0x1c] sm:$0x1]
      %v263 = vld [vmem:[%s254 + $0x20] sm:$0xf]
      %v264 = vld [vmem:[%s254 + $0x24] sm:$0x1]
      %s265 = sadd.s32 %s252, 22
      %s266 = smul.addr %s265, 4
      %s267 = scalar_lea.vmem %s177, %s266
      %v268 = vld [vmem:[%s267] sm:$0xf]
      %v269 = vld [vmem:[%s267 + $0x4] sm:$0x1]
      %v270 = vld [vmem:[%s267 + $0x8] sm:$0xf]
      %v271 = vld [vmem:[%s267 + $0xc] sm:$0x1]
      %v272 = vld [vmem:[%s267 + $0x10] sm:$0xf]
      %v273 = vld [vmem:[%s267 + $0x14] sm:$0x1]
      %v274 = vld [vmem:[%s267 + $0x18] sm:$0xf]
      %v275 = vld [vmem:[%s267 + $0x1c] sm:$0x1]
      %v276 = vld [vmem:[%s267 + $0x20] sm:$0xf]
      %v277 = vld [vmem:[%s267 + $0x24] sm:$0x1]
      %s278 = sadd.s32 %s252, 44
      %s279 = smul.addr %s278, 4
      %s280 = scalar_lea.vmem %s177, %s279
      %v281 = vld [vmem:[%s280] sm:$0xf]
      %v282 = vld [vmem:[%s280 + $0x4] sm:$0x1]
      %v283 = vld [vmem:[%s280 + $0x8] sm:$0xf]
      %v284 = vld [vmem:[%s280 + $0xc] sm:$0x1]
      %v285 = vld [vmem:[%s280 + $0x10] sm:$0xf]
      %v286 = vld [vmem:[%s280 + $0x14] sm:$0x1]
      %v287 = vld [vmem:[%s280 + $0x18] sm:$0xf]
      %v288 = vld [vmem:[%s280 + $0x1c] sm:$0x1]
      %v289 = vld [vmem:[%s280 + $0x20] sm:$0xf]
      %v290 = vld [vmem:[%s280 + $0x24] sm:$0x1]
      %s291 = sadd.s32 %s252, 66
      %s292 = smul.addr %s291, 4
      %s293 = scalar_lea.vmem %s177, %s292
      %v294 = vld [vmem:[%s293] sm:$0xf]
      %v295 = vld [vmem:[%s293 + $0x4] sm:$0x1]
      %v296 = vld [vmem:[%s293 + $0x8] sm:$0xf]
      %v297 = vld [vmem:[%s293 + $0xc] sm:$0x1]
      %v298 = vld [vmem:[%s293 + $0x10] sm:$0xf]
      %v299 = vld [vmem:[%s293 + $0x14] sm:$0x1]
      %v300 = vld [vmem:[%s293 + $0x18] sm:$0xf]
      %v301 = vld [vmem:[%s293 + $0x1c] sm:$0x1]
      %v302 = vld [vmem:[%s293 + $0x20] sm:$0xf]
      %v303 = vld [vmem:[%s293 + $0x24] sm:$0x1]
      %v314 = vunpack.c.l.b16 %v202
      %v315 = vunpack.c.l.b16 %v203
      %v316 = vunpack.c.l.b16 %v204
      %v317 = vunpack.c.l.b16 %v205
      %v318 = vunpack.c.l.b16 %v206
      %v319 = vunpack.c.l.b16 %v207
      %v320 = vunpack.c.l.b16 %v208
      %v321 = vunpack.c.l.b16 %v209
      %v322 = vunpack.c.l.b16 %v210
      %v323 = vunpack.c.l.b16 %v211
      %v324 = vpack.c.b16 %v315, %v314
      %v325 = vpack.c.b16 %v317, %v316
      %v326 = vpack.c.b16 %v319, %v318
      %v327 = vpack.c.b16 %v321, %v320
      %v328 = vpack.c.b16 %v323, %v322
      %v339 = vunpack.c.l.b16 %v215
      %v340 = vunpack.c.l.b16 %v216
      %v341 = vunpack.c.l.b16 %v217
      %v342 = vunpack.c.l.b16 %v218
      %v343 = vunpack.c.l.b16 %v219
      %v344 = vunpack.c.l.b16 %v220
      %v345 = vunpack.c.l.b16 %v221
      %v346 = vunpack.c.l.b16 %v222
      %v347 = vunpack.c.l.b16 %v223
      %v348 = vunpack.c.l.b16 %v224
      %v349 = vpack.c.b16 %v340, %v339
      %v350 = vpack.c.b16 %v342, %v341
      %v351 = vpack.c.b16 %v344, %v343
      %v352 = vpack.c.b16 %v346, %v345
      %v353 = vpack.c.b16 %v348, %v347
      %354 = vrot.lane.b32.xlu0 %v349, 3
      %v355 = vpop.permute.xlu0 %354
      %356 = vrot.lane.b32.xlu0 %v350, 3
      %v357 = vpop.permute.xlu0 %356
      %358 = vrot.lane.b32.xlu0 %v351, 3
      %v359 = vpop.permute.xlu0 %358
      %360 = vrot.lane.b32.xlu0 %v352, 3
      %v361 = vpop.permute.xlu0 %360
      %362 = vrot.lane.b32.xlu0 %v353, 3
      %v363 = vpop.permute.xlu0 %362
      %v365 = vshrl.u32 %v324, 16
      %v367 = vshll.u32 %v324, 16
      %v369 = vrot.slane %v367, 1
      %v370 = vor.u32 %v365, %v369
      %v372 = vshrl.u32 %v325, 16
      %v374 = vshll.u32 %v325, 16
      %v376 = vrot.slane %v374, 1
      %v377 = vor.u32 %v372, %v376
      %v379 = vshrl.u32 %v326, 16
      %v381 = vshll.u32 %v326, 16
      %v383 = vrot.slane %v381, 1
      %v384 = vor.u32 %v379, %v383
      %v386 = vshrl.u32 %v327, 16
      %v388 = vshll.u32 %v327, 16
      %v390 = vrot.slane %v388, 1
      %v391 = vor.u32 %v386, %v390
      %v393 = vshrl.u32 %v328, 16
      %v395 = vshll.u32 %v328, 16
      %v397 = vrot.slane %v395, 1
      %v398 = vor.u32 %v393, %v397
      %399 = vrot.lane.b32.xlu0 %v370, 6
      %v400 = vpop.permute.xlu0 %399
      %401 = vrot.lane.b32.xlu0 %v377, 6
      %v402 = vpop.permute.xlu0 %401
      %403 = vrot.lane.b32.xlu0 %v384, 6
      %v404 = vpop.permute.xlu0 %403
      %405 = vrot.lane.b32.xlu0 %v391, 6
      %v406 = vpop.permute.xlu0 %405
      %407 = vrot.lane.b32.xlu0 %v398, 6
      %v408 = vpop.permute.xlu0 %407
      %v410 = vshrl.u32 %v349, 16
      %v412 = vshll.u32 %v349, 16
      %v414 = vrot.slane %v412, 1
      %v415 = vor.u32 %v410, %v414
      %v417 = vshrl.u32 %v350, 16
      %v419 = vshll.u32 %v350, 16
      %v421 = vrot.slane %v419, 1
      %v422 = vor.u32 %v417, %v421
      %v424 = vshrl.u32 %v351, 16
      %v426 = vshll.u32 %v351, 16
      %v428 = vrot.slane %v426, 1
      %v429 = vor.u32 %v424, %v428
      %v431 = vshrl.u32 %v352, 16
      %v433 = vshll.u32 %v352, 16
      %v435 = vrot.slane %v433, 1
      %v436 = vor.u32 %v431, %v435
      %v438 = vshrl.u32 %v353, 16
      %v440 = vshll.u32 %v353, 16
      %v442 = vrot.slane %v440, 1
      %v443 = vor.u32 %v438, %v442
      %444 = vrot.lane.b32.xlu0 %v415, 9
      %v445 = vpop.permute.xlu0 %444
      %446 = vrot.lane.b32.xlu0 %v422, 9
      %v447 = vpop.permute.xlu0 %446
      %448 = vrot.lane.b32.xlu0 %v429, 9
      %v449 = vpop.permute.xlu0 %448
      %450 = vrot.lane.b32.xlu0 %v436, 9
      %v451 = vpop.permute.xlu0 %450
      %452 = vrot.lane.b32.xlu0 %v443, 9
      %v453 = vpop.permute.xlu0 %452
      %v464 = vunpack.c.l.b16 %v228
      %v465 = vunpack.c.l.b16 %v229
      %v466 = vunpack.c.l.b16 %v230
      %v467 = vunpack.c.l.b16 %v231
      %v468 = vunpack.c.l.b16 %v232
      %v469 = vunpack.c.l.b16 %v233
      %v470 = vunpack.c.l.b16 %v234
      %v471 = vunpack.c.l.b16 %v235
      %v472 = vunpack.c.l.b16 %v236
      %v473 = vunpack.c.l.b16 %v237
      %v474 = vpack.c.b16 %v465, %v464
      %v475 = vpack.c.b16 %v467, %v466
      %v476 = vpack.c.b16 %v469, %v468
      %v477 = vpack.c.b16 %v471, %v470
      %v478 = vpack.c.b16 %v473, %v472
      %479 = vrot.lane.b32.xlu0 %v474, 12
      %v480 = vpop.permute.xlu0 %479
      %481 = vrot.lane.b32.xlu0 %v475, 12
      %v482 = vpop.permute.xlu0 %481
      %483 = vrot.lane.b32.xlu0 %v476, 12
      %v484 = vpop.permute.xlu0 %483
      %485 = vrot.lane.b32.xlu0 %v477, 12
      %v486 = vpop.permute.xlu0 %485
      %487 = vrot.lane.b32.xlu0 %v478, 12
      %v488 = vpop.permute.xlu0 %487
      %v499 = vunpack.c.l.b16 %v241
      %v500 = vunpack.c.l.b16 %v242
      %v501 = vunpack.c.l.b16 %v243
      %v502 = vunpack.c.l.b16 %v244
      %v503 = vunpack.c.l.b16 %v245
      %v504 = vunpack.c.l.b16 %v246
      %v505 = vunpack.c.l.b16 %v247
      %v506 = vunpack.c.l.b16 %v248
      %v507 = vunpack.c.l.b16 %v249
      %v508 = vunpack.c.l.b16 %v250
      %v509 = vpack.c.b16 %v500, %v499
      %v510 = vpack.c.b16 %v502, %v501
      %v511 = vpack.c.b16 %v504, %v503
      %v512 = vpack.c.b16 %v506, %v505
      %v513 = vpack.c.b16 %v508, %v507
      %514 = vrot.lane.b32.xlu0 %v509, 15
      %v515 = vpop.permute.xlu0 %514
      %516 = vrot.lane.b32.xlu0 %v510, 15
      %v517 = vpop.permute.xlu0 %516
      %518 = vrot.lane.b32.xlu0 %v511, 15
      %v519 = vpop.permute.xlu0 %518
      %520 = vrot.lane.b32.xlu0 %v512, 15
      %v521 = vpop.permute.xlu0 %520
      %522 = vrot.lane.b32.xlu0 %v513, 15
      %v523 = vpop.permute.xlu0 %522
      %v525 = vshrl.u32 %v474, 16
      %v527 = vshll.u32 %v474, 16
      %v529 = vrot.slane %v527, 1
      %v530 = vor.u32 %v525, %v529
      %v532 = vshrl.u32 %v475, 16
      %v534 = vshll.u32 %v475, 16
      %v536 = vrot.slane %v534, 1
      %v537 = vor.u32 %v532, %v536
      %v539 = vshrl.u32 %v476, 16
      %v541 = vshll.u32 %v476, 16
      %v543 = vrot.slane %v541, 1
      %v544 = vor.u32 %v539, %v543
      %v546 = vshrl.u32 %v477, 16
      %v548 = vshll.u32 %v477, 16
      %v550 = vrot.slane %v548, 1
      %v551 = vor.u32 %v546, %v550
      %v553 = vshrl.u32 %v478, 16
      %v555 = vshll.u32 %v478, 16
      %v557 = vrot.slane %v555, 1
      %v558 = vor.u32 %v553, %v557
      %559 = vrot.lane.b32.xlu0 %v530, 18
      %v560 = vpop.permute.xlu0 %559
      %561 = vrot.lane.b32.xlu0 %v537, 18
      %v562 = vpop.permute.xlu0 %561
      %563 = vrot.lane.b32.xlu0 %v544, 18
      %v564 = vpop.permute.xlu0 %563
      %565 = vrot.lane.b32.xlu0 %v551, 18
      %v566 = vpop.permute.xlu0 %565
      %567 = vrot.lane.b32.xlu0 %v558, 18
      %v568 = vpop.permute.xlu0 %567
      %v570 = vshrl.u32 %v509, 16
      %v572 = vshll.u32 %v509, 16
      %v574 = vrot.slane %v572, 1
      %v575 = vor.u32 %v570, %v574
      %v577 = vshrl.u32 %v510, 16
      %v579 = vshll.u32 %v510, 16
      %v581 = vrot.slane %v579, 1
      %v582 = vor.u32 %v577, %v581
      %v584 = vshrl.u32 %v511, 16
      %v586 = vshll.u32 %v511, 16
      %v588 = vrot.slane %v586, 1
      %v589 = vor.u32 %v584, %v588
      %v591 = vshrl.u32 %v512, 16
      %v593 = vshll.u32 %v512, 16
      %v595 = vrot.slane %v593, 1
      %v596 = vor.u32 %v591, %v595
      %v598 = vshrl.u32 %v513, 16
      %v600 = vshll.u32 %v513, 16
      %v602 = vrot.slane %v600, 1
      %v603 = vor.u32 %v598, %v602
      %604 = vrot.lane.b32.xlu0 %v575, 21
      %v605 = vpop.permute.xlu0 %604
      %606 = vrot.lane.b32.xlu0 %v582, 21
      %v607 = vpop.permute.xlu0 %606
      %608 = vrot.lane.b32.xlu0 %v589, 21
      %v609 = vpop.permute.xlu0 %608
      %610 = vrot.lane.b32.xlu0 %v596, 21
      %v611 = vpop.permute.xlu0 %610
      %612 = vrot.lane.b32.xlu0 %v603, 21
      %v613 = vpop.permute.xlu0 %612
      %v624 = vunpack.c.l.b16 %v255
      %v625 = vunpack.c.l.b16 %v256
      %v626 = vunpack.c.l.b16 %v257
      %v627 = vunpack.c.l.b16 %v258
      %v628 = vunpack.c.l.b16 %v259
      %v629 = vunpack.c.l.b16 %v260
      %v630 = vunpack.c.l.b16 %v261
      %v631 = vunpack.c.l.b16 %v262
      %v632 = vunpack.c.l.b16 %v263
      %v633 = vunpack.c.l.b16 %v264
      %v634 = vpack.c.b16 %v625, %v624
      %v635 = vpack.c.b16 %v627, %v626
      %v636 = vpack.c.b16 %v629, %v628
      %v637 = vpack.c.b16 %v631, %v630
      %v638 = vpack.c.b16 %v633, %v632
      %639 = vrot.lane.b32.xlu0 %v634, 24
      %v640 = vpop.permute.xlu0 %639
      %641 = vrot.lane.b32.xlu0 %v635, 24
      %v642 = vpop.permute.xlu0 %641
      %643 = vrot.lane.b32.xlu0 %v636, 24
      %v644 = vpop.permute.xlu0 %643
      %645 = vrot.lane.b32.xlu0 %v637, 24
      %v646 = vpop.permute.xlu0 %645
      %647 = vrot.lane.b32.xlu0 %v638, 24
      %v648 = vpop.permute.xlu0 %647
      %v659 = vunpack.c.l.b16 %v268
      %v660 = vunpack.c.l.b16 %v269
      %v661 = vunpack.c.l.b16 %v270
      %v662 = vunpack.c.l.b16 %v271
      %v663 = vunpack.c.l.b16 %v272
      %v664 = vunpack.c.l.b16 %v273
      %v665 = vunpack.c.l.b16 %v274
      %v666 = vunpack.c.l.b16 %v275
      %v667 = vunpack.c.l.b16 %v276
      %v668 = vunpack.c.l.b16 %v277
      %v669 = vpack.c.b16 %v660, %v659
      %v670 = vpack.c.b16 %v662, %v661
      %v671 = vpack.c.b16 %v664, %v663
      %v672 = vpack.c.b16 %v666, %v665
      %v673 = vpack.c.b16 %v668, %v667
      %674 = vrot.lane.b32.xlu0 %v669, 27
      %v675 = vpop.permute.xlu0 %674
      %676 = vrot.lane.b32.xlu0 %v670, 27
      %v677 = vpop.permute.xlu0 %676
      %678 = vrot.lane.b32.xlu0 %v671, 27
      %v679 = vpop.permute.xlu0 %678
      %680 = vrot.lane.b32.xlu0 %v672, 27
      %v681 = vpop.permute.xlu0 %680
      %682 = vrot.lane.b32.xlu0 %v673, 27
      %v683 = vpop.permute.xlu0 %682
      %v685 = vshrl.u32 %v634, 16
      %v687 = vshll.u32 %v634, 16
      %v689 = vrot.slane %v687, 1
      %v690 = vor.u32 %v685, %v689
      %v692 = vshrl.u32 %v635, 16
      %v694 = vshll.u32 %v635, 16
      %v696 = vrot.slane %v694, 1
      %v697 = vor.u32 %v692, %v696
      %v699 = vshrl.u32 %v636, 16
      %v701 = vshll.u32 %v636, 16
      %v703 = vrot.slane %v701, 1
      %v704 = vor.u32 %v699, %v703
      %v706 = vshrl.u32 %v637, 16
      %v708 = vshll.u32 %v637, 16
      %v710 = vrot.slane %v708, 1
      %v711 = vor.u32 %v706, %v710
      %v713 = vshrl.u32 %v638, 16
      %v715 = vshll.u32 %v638, 16
      %v717 = vrot.slane %v715, 1
      %v718 = vor.u32 %v713, %v717
      %719 = vrot.lane.b32.xlu0 %v690, 30
      %v720 = vpop.permute.xlu0 %719
      %721 = vrot.lane.b32.xlu0 %v697, 30
      %v722 = vpop.permute.xlu0 %721
      %723 = vrot.lane.b32.xlu0 %v704, 30
      %v724 = vpop.permute.xlu0 %723
      %725 = vrot.lane.b32.xlu0 %v711, 30
      %v726 = vpop.permute.xlu0 %725
      %727 = vrot.lane.b32.xlu0 %v718, 30
      %v728 = vpop.permute.xlu0 %727
      %v730 = vshrl.u32 %v669, 16
      %v732 = vshll.u32 %v669, 16
      %v734 = vrot.slane %v732, 1
      %v735 = vor.u32 %v730, %v734
      %v737 = vshrl.u32 %v670, 16
      %v739 = vshll.u32 %v670, 16
      %v741 = vrot.slane %v739, 1
      %v742 = vor.u32 %v737, %v741
      %v744 = vshrl.u32 %v671, 16
      %v746 = vshll.u32 %v671, 16
      %v748 = vrot.slane %v746, 1
      %v749 = vor.u32 %v744, %v748
      %v751 = vshrl.u32 %v672, 16
      %v753 = vshll.u32 %v672, 16
      %v755 = vrot.slane %v753, 1
      %v756 = vor.u32 %v751, %v755
      %v758 = vshrl.u32 %v673, 16
      %v760 = vshll.u32 %v673, 16
      %v762 = vrot.slane %v760, 1
      %v763 = vor.u32 %v758, %v762
      %764 = vrot.lane.b32.xlu0 %v735, 33
      %v765 = vpop.permute.xlu0 %764
      %766 = vrot.lane.b32.xlu0 %v742, 33
      %v767 = vpop.permute.xlu0 %766
      %768 = vrot.lane.b32.xlu0 %v749, 33
      %v769 = vpop.permute.xlu0 %768
      %770 = vrot.lane.b32.xlu0 %v756, 33
      %v771 = vpop.permute.xlu0 %770
      %772 = vrot.lane.b32.xlu0 %v763, 33
      %v773 = vpop.permute.xlu0 %772
      %v784 = vunpack.c.l.b16 %v281
      %v785 = vunpack.c.l.b16 %v282
      %v786 = vunpack.c.l.b16 %v283
      %v787 = vunpack.c.l.b16 %v284
      %v788 = vunpack.c.l.b16 %v285
      %v789 = vunpack.c.l.b16 %v286
      %v790 = vunpack.c.l.b16 %v287
      %v791 = vunpack.c.l.b16 %v288
      %v792 = vunpack.c.l.b16 %v289
      %v793 = vunpack.c.l.b16 %v290
      %v794 = vpack.c.b16 %v785, %v784
      %v795 = vpack.c.b16 %v787, %v786
      %v796 = vpack.c.b16 %v789, %v788
      %v797 = vpack.c.b16 %v791, %v790
      %v798 = vpack.c.b16 %v793, %v792
      %799 = vrot.lane.b32.xlu0 %v794, 36
      %v800 = vpop.permute.xlu0 %799
      %801 = vrot.lane.b32.xlu0 %v795, 36
      %v802 = vpop.permute.xlu0 %801
      %803 = vrot.lane.b32.xlu0 %v796, 36
      %v804 = vpop.permute.xlu0 %803
      %805 = vrot.lane.b32.xlu0 %v797, 36
      %v806 = vpop.permute.xlu0 %805
      %807 = vrot.lane.b32.xlu0 %v798, 36
      %v808 = vpop.permute.xlu0 %807
      %v819 = vunpack.c.l.b16 %v294
      %v820 = vunpack.c.l.b16 %v295
      %v821 = vunpack.c.l.b16 %v296
      %v822 = vunpack.c.l.b16 %v297
      %v823 = vunpack.c.l.b16 %v298
      %v824 = vunpack.c.l.b16 %v299
      %v825 = vunpack.c.l.b16 %v300
      %v826 = vunpack.c.l.b16 %v301
      %v827 = vunpack.c.l.b16 %v302
      %v828 = vunpack.c.l.b16 %v303
      %v829 = vpack.c.b16 %v820, %v819
      %v830 = vpack.c.b16 %v822, %v821
      %v831 = vpack.c.b16 %v824, %v823
      %v832 = vpack.c.b16 %v826, %v825
      %v833 = vpack.c.b16 %v828, %v827
      %834 = vrot.lane.b32.xlu0 %v829, 39
      %v835 = vpop.permute.xlu0 %834
      %836 = vrot.lane.b32.xlu0 %v830, 39
      %v837 = vpop.permute.xlu0 %836
      %838 = vrot.lane.b32.xlu0 %v831, 39
      %v839 = vpop.permute.xlu0 %838
      %840 = vrot.lane.b32.xlu0 %v832, 39
      %v841 = vpop.permute.xlu0 %840
      %842 = vrot.lane.b32.xlu0 %v833, 39
      %v843 = vpop.permute.xlu0 %842
      %v845 = vshrl.u32 %v794, 16
      %v847 = vshll.u32 %v794, 16
      %v849 = vrot.slane %v847, 1
      %v850 = vor.u32 %v845, %v849
      %v852 = vshrl.u32 %v795, 16
      %v854 = vshll.u32 %v795, 16
      %v856 = vrot.slane %v854, 1
      %v857 = vor.u32 %v852, %v856
      %v859 = vshrl.u32 %v796, 16
      %v861 = vshll.u32 %v796, 16
      %v863 = vrot.slane %v861, 1
      %v864 = vor.u32 %v859, %v863
      %v866 = vshrl.u32 %v797, 16
      %v868 = vshll.u32 %v797, 16
      %v870 = vrot.slane %v868, 1
      %v871 = vor.u32 %v866, %v870
      %v873 = vshrl.u32 %v798, 16
      %v875 = vshll.u32 %v798, 16
      %v877 = vrot.slane %v875, 1
      %v878 = vor.u32 %v873, %v877
      %879 = vrot.lane.b32.xlu0 %v850, 42
      %v880 = vpop.permute.xlu0 %879
      %881 = vrot.lane.b32.xlu0 %v857, 42
      %v882 = vpop.permute.xlu0 %881
      %883 = vrot.lane.b32.xlu0 %v864, 42
      %v884 = vpop.permute.xlu0 %883
      %885 = vrot.lane.b32.xlu0 %v871, 42
      %v886 = vpop.permute.xlu0 %885
      %887 = vrot.lane.b32.xlu0 %v878, 42
      %v888 = vpop.permute.xlu0 %887
      %v890 = vshrl.u32 %v829, 16
      %v892 = vshll.u32 %v829, 16
      %v894 = vrot.slane %v892, 1
      %v895 = vor.u32 %v890, %v894
      %v897 = vshrl.u32 %v830, 16
      %v899 = vshll.u32 %v830, 16
      %v901 = vrot.slane %v899, 1
      %v902 = vor.u32 %v897, %v901
      %v904 = vshrl.u32 %v831, 16
      %v906 = vshll.u32 %v831, 16
      %v908 = vrot.slane %v906, 1
      %v909 = vor.u32 %v904, %v908
      %v911 = vshrl.u32 %v832, 16
      %v913 = vshll.u32 %v832, 16
      %v915 = vrot.slane %v913, 1
      %v916 = vor.u32 %v911, %v915
      %v918 = vshrl.u32 %v833, 16
      %v920 = vshll.u32 %v833, 16
      %v922 = vrot.slane %v920, 1
      %v923 = vor.u32 %v918, %v922
      %924 = vrot.lane.b32.xlu0 %v895, 45
      %v925 = vpop.permute.xlu0 %924
      %926 = vrot.lane.b32.xlu0 %v902, 45
      %v927 = vpop.permute.xlu0 %926
      %928 = vrot.lane.b32.xlu0 %v909, 45
      %v929 = vpop.permute.xlu0 %928
      %930 = vrot.lane.b32.xlu0 %v916, 45
      %v931 = vpop.permute.xlu0 %930
      %932 = vrot.lane.b32.xlu0 %v923, 45
      %v933 = vpop.permute.xlu0 %932
      %vm934 = vcmask 23552
      %v936 = vsel %vm934, %v324, %v355
      %v938 = vsel %vm934, %v325, %v357
      %v940 = vsel %vm934, %v326, %v359
      %v942 = vsel %vm934, %v327, %v361
      %v944 = vsel %vm934, %v328, %v363
      %vm945 = vcmask 48128
      %v947 = vsel %vm945, %v936, %v400
      %v949 = vsel %vm945, %v938, %v402
      %v951 = vsel %vm945, %v940, %v404
      %v953 = vsel %vm945, %v942, %v406
      %v955 = vsel %vm945, %v944, %v408
      %vm956 = vcmask 72704
      %v958 = vsel %vm956, %v947, %v445
      %v960 = vsel %vm956, %v949, %v447
      %v962 = vsel %vm956, %v951, %v449
      %v964 = vsel %vm956, %v953, %v451
      %v966 = vsel %vm956, %v955, %v453
      %vm967 = vcmask 97280
      %v969 = vsel %vm967, %v958, %v480
      %v971 = vsel %vm967, %v960, %v482
      %v973 = vsel %vm967, %v962, %v484
      %v975 = vsel %vm967, %v964, %v486
      %v977 = vsel %vm967, %v966, %v488
      %vm978 = vcmask 121856
      %v980 = vsel %vm978, %v969, %v515
      %v982 = vsel %vm978, %v971, %v517
      %v984 = vsel %vm978, %v973, %v519
      %v986 = vsel %vm978, %v975, %v521
      %v988 = vsel %vm978, %v977, %v523
      %vm989 = vcmask 146432
      %v991 = vsel %vm989, %v980, %v560
      %v993 = vsel %vm989, %v982, %v562
      %v995 = vsel %vm989, %v984, %v564
      %v997 = vsel %vm989, %v986, %v566
      %v999 = vsel %vm989, %v988, %v568
      %vm1000 = vcmask 171008
      %v1002 = vsel %vm1000, %v991, %v605
      %v1004 = vsel %vm1000, %v993, %v607
      %v1006 = vsel %vm1000, %v995, %v609
      %v1008 = vsel %vm1000, %v997, %v611
      %v1010 = vsel %vm1000, %v999, %v613
      %vm1011 = vcmask 195584
      %v1013 = vsel %vm1011, %v1002, %v640
      %v1015 = vsel %vm1011, %v1004, %v642
      %v1017 = vsel %vm1011, %v1006, %v644
      %v1019 = vsel %vm1011, %v1008, %v646
      %v1021 = vsel %vm1011, %v1010, %v648
      %vm1022 = vcmask 220160
      %v1024 = vsel %vm1022, %v1013, %v675
      %v1026 = vsel %vm1022, %v1015, %v677
      %v1028 = vsel %vm1022, %v1017, %v679
      %v1030 = vsel %vm1022, %v1019, %v681
      %v1032 = vsel %vm1022, %v1021, %v683
      %vm1033 = vcmask 244736
      %v1035 = vsel %vm1033, %v1024, %v720
      %v1037 = vsel %vm1033, %v1026, %v722
      %v1039 = vsel %vm1033, %v1028, %v724
      %v1041 = vsel %vm1033, %v1030, %v726
      %v1043 = vsel %vm1033, %v1032, %v728
      %vm1044 = vcmask 269312
      %v1046 = vsel %vm1044, %v1035, %v765
      %v1048 = vsel %vm1044, %v1037, %v767
      %v1050 = vsel %vm1044, %v1039, %v769
      %v1052 = vsel %vm1044, %v1041, %v771
      %v1054 = vsel %vm1044, %v1043, %v773
      %vm1055 = vcmask 293888
      %v1057 = vsel %vm1055, %v1046, %v800
      %v1059 = vsel %vm1055, %v1048, %v802
      %v1061 = vsel %vm1055, %v1050, %v804
      %v1063 = vsel %vm1055, %v1052, %v806
      %v1065 = vsel %vm1055, %v1054, %v808
      %vm1066 = vcmask 318464
      %v1068 = vsel %vm1066, %v1057, %v835
      %v1070 = vsel %vm1066, %v1059, %v837
      %v1072 = vsel %vm1066, %v1061, %v839
      %v1074 = vsel %vm1066, %v1063, %v841
      %v1076 = vsel %vm1066, %v1065, %v843
      %vm1077 = vcmask 343040
      %v1079 = vsel %vm1077, %v1068, %v880
      %v1081 = vsel %vm1077, %v1070, %v882
      %v1083 = vsel %vm1077, %v1072, %v884
      %v1085 = vsel %vm1077, %v1074, %v886
      %v1087 = vsel %vm1077, %v1076, %v888
      %vm1088 = vcmask 367616
      %v1090 = vsel %vm1088, %v1079, %v925
      %v1092 = vsel %vm1088, %v1081, %v927
      %v1094 = vsel %vm1088, %v1083, %v929
      %v1096 = vsel %vm1088, %v1085, %v931
      %v1098 = vsel %vm1088, %v1087, %v933
      %v1100 = vperm.slane %v198, 0
      %v1108 = vunpack.c.l.b16 %v192
      %v1109 = vunpack.c.l.b16 %v193
      %v1110 = vunpack.c.l.b16 %v194
      %v1111 = vunpack.c.l.b16 %v195
      %v1112 = vunpack.c.l.b16 %v196
      %v1113 = vunpack.c.l.b16 %v197
      %v1114 = vpack.c.b16 %v1109, %v1108
      %v1115 = vpack.c.b16 %v1111, %v1110
      %v1116 = vpack.c.b16 %v1113, %v1112
      %vm1120 = vcmask 392192
      %v1121 = vsel %vm1120, %v1090, 0
      %1123 = vmatpush.bf16.msra.mxu0 0
      %1124 = vmatpush.bf16.msra.mxu0 0
      %1125 = vmatpush.bf16.msra.mxu0 0
      %1126 = vmatpush.bf16.msra.mxu0 0
      %1127 = vmatpush.bf16.msra.mxu0 0
      %1128 = vmatpush.bf16.msra.mxu0 %v1116
      %1129 = vmatpush.bf16.msra.mxu0 %v1115
      %1130 = vmatpush.bf16.msra.mxu0 %v1114
      %1131 = vmatmul.bf16.gmra.mxu0 %v1121
      %v1132 = vpop.f32.mrf.mxu0
      %v1133 = vadd.f32 %v1100, %v1132
      %v1134 = vpop.f32.mrf.mxu0
      %v1135 = vadd.f32 %v1100, %v1134
      %1136 = vdwg.mxu0
      %s1137 = smul.u32 %s184, 16
      %s1138 = scalar_lea.vmem [#allocation2], %s1137
      %vm1139 = vcmask 64512
      %1140 = vst.msk [vmem:[%s1138] sm:$0xff] %vm1139, %v1133
      %vm1141 = vcmask 57344
      %1142 = vst.msk [vmem:[%s1138 + $0x8] sm:$0x1] %vm1141, %v1135
      %v1143 = vsel %vm1120, %v1092, 0
      %1145 = vmatpush.bf16.msra.mxu0 0
      %1146 = vmatpush.bf16.msra.mxu0 0
      %1147 = vmatpush.bf16.msra.mxu0 0
      %1148 = vmatpush.bf16.msra.mxu0 0
      %1149 = vmatpush.bf16.msra.mxu0 0
      %1150 = vmatpush.bf16.msra.mxu0 %v1116
      %1151 = vmatpush.bf16.msra.mxu0 %v1115
      %1152 = vmatpush.bf16.msra.mxu0 %v1114
      %1153 = vmatmul.bf16.gmra.mxu0 %v1143
      %v1154 = vpop.f32.mrf.mxu0
      %v1155 = vadd.f32 %v1100, %v1154
      %v1156 = vpop.f32.mrf.mxu0
      %v1157 = vadd.f32 %v1100, %v1156
      %1158 = vdwg.mxu0
      %s1159 = smul.u32 %s251, 16
      %s1160 = scalar_lea.vmem [#allocation2], %s1159
      %1161 = vst.msk [vmem:[%s1160] sm:$0xff] %vm1139, %v1155
      %1162 = vst.msk [vmem:[%s1160 + $0x8] sm:$0x1] %vm1141, %v1157
      %v1163 = vsel %vm1120, %v1094, 0
      %1165 = vmatpush.bf16.msra.mxu0 0
      %1166 = vmatpush.bf16.msra.mxu0 0
      %1167 = vmatpush.bf16.msra.mxu0 0
      %1168 = vmatpush.bf16.msra.mxu0 0
      %1169 = vmatpush.bf16.msra.mxu0 0
      %1170 = vmatpush.bf16.msra.mxu0 %v1116
      %1171 = vmatpush.bf16.msra.mxu0 %v1115
      %1172 = vmatpush.bf16.msra.mxu0 %v1114
      %1173 = vmatmul.bf16.gmra.mxu0 %v1163
      %v1174 = vpop.f32.mrf.mxu0
      %v1175 = vadd.f32 %v1100, %v1174
      %v1176 = vpop.f32.mrf.mxu0
      %v1177 = vadd.f32 %v1100, %v1176
      %1178 = vdwg.mxu0
      %s1179 = sadd.s32 %s184, 2
      %s1180 = smul.u32 %s1179, 16
      %s1181 = scalar_lea.vmem [#allocation2], %s1180
      %1182 = vst.msk [vmem:[%s1181] sm:$0xff] %vm1139, %v1175
      %1183 = vst.msk [vmem:[%s1181 + $0x8] sm:$0x1] %vm1141, %v1177
      %v1184 = vsel %vm1120, %v1096, 0
      %1186 = vmatpush.bf16.msra.mxu0 0
      %1187 = vmatpush.bf16.msra.mxu0 0
      %1188 = vmatpush.bf16.msra.mxu0 0
      %1189 = vmatpush.bf16.msra.mxu0 0
      %1190 = vmatpush.bf16.msra.mxu0 0
      %1191 = vmatpush.bf16.msra.mxu0 %v1116
      %1192 = vmatpush.bf16.msra.mxu0 %v1115
      %1193 = vmatpush.bf16.msra.mxu0 %v1114
      %1194 = vmatmul.bf16.gmra.mxu0 %v1184
      %v1195 = vpop.f32.mrf.mxu0
      %v1196 = vadd.f32 %v1100, %v1195
      %v1197 = vpop.f32.mrf.mxu0
      %v1198 = vadd.f32 %v1100, %v1197
      %1199 = vdwg.mxu0
      %s1200 = sadd.s32 %s184, 3
      %s1201 = smul.u32 %s1200, 16
      %s1202 = scalar_lea.vmem [#allocation2], %s1201
      %1203 = vst.msk [vmem:[%s1202] sm:$0xff] %vm1139, %v1196
      %1204 = vst.msk [vmem:[%s1202 + $0x8] sm:$0x1] %vm1141, %v1198
      %v1205 = vsel %vm1120, %v1098, 0
      %1207 = vmatpush.bf16.msra.mxu0 0
      %1208 = vmatpush.bf16.msra.mxu0 0
      %1209 = vmatpush.bf16.msra.mxu0 0
      %1210 = vmatpush.bf16.msra.mxu0 0
      %1211 = vmatpush.bf16.msra.mxu0 0
      %1212 = vmatpush.bf16.msra.mxu0 %v1116
      %1213 = vmatpush.bf16.msra.mxu0 %v1115
      %1214 = vmatpush.bf16.msra.mxu0 %v1114
      %1215 = vmatmul.bf16.gmra.mxu0 %v1205
      %v1216 = vpop.f32.mrf.mxu0
      %v1217 = vadd.f32 %v1100, %v1216
      %v1218 = vpop.f32.mrf.mxu0
      %v1219 = vadd.f32 %v1100, %v1218
      %1220 = vdwg.mxu0
      %s1221 = sadd.s32 %s184, 4
      %s1222 = smul.u32 %s1221, 16
      %s1223 = scalar_lea.vmem [#allocation2], %s1222
      %1224 = vst.msk [vmem:[%s1223] sm:$0xff] %vm1139, %v1217
      %1225 = vst.msk [vmem:[%s1223 + $0x8] sm:$0x1] %vm1141, %v1219
      %p1226 = scmp.eq.s32.totalorder %s19, 1
      // Predicated region
      $region37: #{tpu_custom_call.1} parent=31 // pred_check
        %p1227 = pneg %p1226
      $region38: #{tpu_custom_call.1} parent=31 // pred_check_branch
        %1229 = sbr.rel (%p1227) target = $region40
      $region39: #{tpu_custom_call.1} parent=31 // pred_region
        %v1230 = vld [vmem:[#allocation2] sm:$0xff]
        %v1231 = vld [vmem:[#allocation2 + $0x8] sm:$0x1]
        %v1232 = vld [vmem:[#allocation2 + $0x10] sm:$0xff]
        %v1233 = vld [vmem:[#allocation2 + $0x18] sm:$0x1]
        %v1234 = vld [vmem:[#allocation2 + $0x20] sm:$0xff]
        %v1235 = vld [vmem:[#allocation2 + $0x28] sm:$0x1]
        %v1236 = vld [vmem:[#allocation2 + $0x30] sm:$0xff]
        %v1237 = vld [vmem:[#allocation2 + $0x38] sm:$0x1]
        %v1238 = vld [vmem:[#allocation2 + $0x40] sm:$0xff]
        %v1239 = vld [vmem:[#allocation2 + $0x48] sm:$0x1]
        %v1240 = vld [vmem:[#allocation2 + $0x50] sm:$0xff]
        %v1241 = vld [vmem:[#allocation2 + $0x58] sm:$0x1]
        %v1242 = vld [vmem:[#allocation2 + $0x60] sm:$0xff]
        %v1243 = vld [vmem:[#allocation2 + $0x68] sm:$0x1]
        %v1244 = vld [vmem:[#allocation2 + $0x70] sm:$0xff]
        %v1245 = vld [vmem:[#allocation2 + $0x78] sm:$0x1]
        %v1246 = vld [vmem:[#allocation2 + $0x80] sm:$0xff]
        %v1247 = vld [vmem:[#allocation2 + $0x88] sm:$0x1]
        %vm1248 = vcmp.ge.f32.partialorder %v1230, 0.0
        %vm1249 = vcmp.ge.f32.partialorder %v1231, 0.0
        %vm1250 = vcmp.ge.f32.partialorder %v1232, 0.0
        %vm1251 = vcmp.ge.f32.partialorder %v1233, 0.0
        %vm1252 = vcmp.ge.f32.partialorder %v1234, 0.0
        %vm1253 = vcmp.ge.f32.partialorder %v1235, 0.0
        %vm1254 = vcmp.ge.f32.partialorder %v1236, 0.0
        %vm1255 = vcmp.ge.f32.partialorder %v1237, 0.0
        %vm1256 = vcmp.ge.f32.partialorder %v1238, 0.0
        %vm1257 = vcmp.ge.f32.partialorder %v1239, 0.0
        %vm1258 = vcmp.ge.f32.partialorder %v1240, 0.0
        %vm1259 = vcmp.ge.f32.partialorder %v1241, 0.0
        %vm1260 = vcmp.ge.f32.partialorder %v1242, 0.0
        %vm1261 = vcmp.ge.f32.partialorder %v1243, 0.0
        %vm1262 = vcmp.ge.f32.partialorder %v1244, 0.0
        %vm1263 = vcmp.ge.f32.partialorder %v1245, 0.0
        %vm1264 = vcmp.ge.f32.partialorder %v1246, 0.0
        %vm1265 = vcmp.ge.f32.partialorder %v1247, 0.0
        %v1266 = vmul.f32 %v1230, 0.2
        %v1267 = vmul.f32 %v1231, 0.2
        %v1268 = vmul.f32 %v1232, 0.2
        %v1269 = vmul.f32 %v1233, 0.2
        %v1270 = vmul.f32 %v1234, 0.2
        %v1271 = vmul.f32 %v1235, 0.2
        %v1272 = vmul.f32 %v1236, 0.2
        %v1273 = vmul.f32 %v1237, 0.2
        %v1274 = vmul.f32 %v1238, 0.2
        %v1275 = vmul.f32 %v1239, 0.2
        %v1276 = vmul.f32 %v1240, 0.2
        %v1277 = vmul.f32 %v1241, 0.2
        %v1278 = vmul.f32 %v1242, 0.2
        %v1279 = vmul.f32 %v1243, 0.2
        %v1280 = vmul.f32 %v1244, 0.2
        %v1281 = vmul.f32 %v1245, 0.2
        %v1282 = vmul.f32 %v1246, 0.2
        %v1283 = vmul.f32 %v1247, 0.2
        %v1284 = vsel %vm1248, %v1230, %v1266
        %v1285 = vsel %vm1249, %v1231, %v1267
        %v1286 = vsel %vm1250, %v1232, %v1268
        %v1287 = vsel %vm1251, %v1233, %v1269
        %v1288 = vsel %vm1252, %v1234, %v1270
        %v1289 = vsel %vm1253, %v1235, %v1271
        %v1290 = vsel %vm1254, %v1236, %v1272
        %v1291 = vsel %vm1255, %v1237, %v1273
        %v1292 = vsel %vm1256, %v1238, %v1274
        %v1293 = vsel %vm1257, %v1239, %v1275
        %v1294 = vsel %vm1258, %v1240, %v1276
        %v1295 = vsel %vm1259, %v1241, %v1277
        %v1296 = vsel %vm1260, %v1242, %v1278
        %v1297 = vsel %vm1261, %v1243, %v1279
        %v1298 = vsel %vm1262, %v1244, %v1280
        %v1299 = vsel %vm1263, %v1245, %v1281
        %v1300 = vsel %vm1264, %v1246, %v1282
        %v1301 = vsel %vm1265, %v1247, %v1283
        %1302 = vst.msk [vmem:[%s182] sm:$0xff] %vm1139, %v1284
        %1303 = vst.msk [vmem:[%s182 + $0x8] sm:$0x1] %vm1141, %v1285
        %1304 = vst.msk [vmem:[%s182 + $0x10] sm:$0xff] %vm1139, %v1286
        %1305 = vst.msk [vmem:[%s182 + $0x18] sm:$0x1] %vm1141, %v1287
        %1306 = vst.msk [vmem:[%s182 + $0x20] sm:$0xff] %vm1139, %v1288
        %1307 = vst.msk [vmem:[%s182 + $0x28] sm:$0x1] %vm1141, %v1289
        %1308 = vst.msk [vmem:[%s182 + $0x30] sm:$0xff] %vm1139, %v1290
        %1309 = vst.msk [vmem:[%s182 + $0x38] sm:$0x1] %vm1141, %v1291
        %1310 = vst.msk [vmem:[%s182 + $0x40] sm:$0xff] %vm1139, %v1292
        %1311 = vst.msk [vmem:[%s182 + $0x48] sm:$0x1] %vm1141, %v1293
        %1312 = vst.msk [vmem:[%s182 + $0x50] sm:$0xff] %vm1139, %v1294
        %1313 = vst.msk [vmem:[%s182 + $0x58] sm:$0x1] %vm1141, %v1295
        %1314 = vst.msk [vmem:[%s182 + $0x60] sm:$0xff] %vm1139, %v1296
        %1315 = vst.msk [vmem:[%s182 + $0x68] sm:$0x1] %vm1141, %v1297
        %1316 = vst.msk [vmem:[%s182 + $0x70] sm:$0xff] %vm1139, %v1298
        %1317 = vst.msk [vmem:[%s182 + $0x78] sm:$0x1] %vm1141, %v1299
        %1318 = vst.msk [vmem:[%s182 + $0x80] sm:$0xff] %vm1139, %v1300
        %1319 = vst.msk [vmem:[%s182 + $0x88] sm:$0x1] %vm1141, %v1301
      $region40: #{tpu_custom_call.1} parent=31 // pred_fallthru
        _
      %p1320 = scmp.lt.s32.totalorder %s18, 1
      %s1321 = scalar_select %p1320, %s18, 1
      %s1322 = smul.addr %s1321, 18
      %s1323 = smul.addr %s1322, 8
      %s1324 = scalar_lea.vmem %s3, %s1323
      // Predicated region
      $region41: #{tpu_custom_call.1} parent=31 // pred_check
        %p1325 = pneg %p112
      $region42: #{tpu_custom_call.1} parent=31 // pred_check_branch
        %1327 = sbr.rel (%p1325) target = $region44
      $region43: #{tpu_custom_call.1} parent=31 // pred_region
        _
      $region44: #{tpu_custom_call.1} parent=31 // pred_fallthru
        _
    $region32: #{tpu_custom_call.1} parent=5 // pred_fallthru
      _
    %p1328 = scmp.le.s32.totalorder 2, %s9
    // Predicated region
    $region45: #{tpu_custom_call.1} parent=5 // pred_check
      %p1329 = pneg %p1328
    $region46: #{tpu_custom_call.1} parent=5 // pred_check_branch
      %1331 = sbr.rel (%p1329) target = $region48
    $region47: #{tpu_custom_call.1} parent=5 // pred_region
      %s1332 = ssub.s32 %s9, 2
      // Predicated region
      $region49: #{tpu_custom_call.1} parent=47 // pred_check
        %p1333 = pneg %p118
      $region50: #{tpu_custom_call.1} parent=47 // pred_check_branch
        %1335 = sbr.rel (%p1333) target = $region52
      $region51: #{tpu_custom_call.1} parent=47 // pred_region
        %p1336 = scmp.lt.s32.totalorder %s20, 1
        %s1337 = scalar_select %p1336, %s20, 1
        %s1338 = smul.addr %s1337, 18
        %s1339 = smul.addr %s1338, 8
        %s1340 = scalar_lea.vmem %s3, %s1339
      $region52: #{tpu_custom_call.1} parent=47 // pred_fallthru
        _
    $region48: #{tpu_custom_call.1} parent=5 // pred_fallthru
      _
  $region6: #{tpu_custom_call.1} parent=0 // loop_footer
    %s13 = sadd.s32 1, %s9
  $region7: #{tpu_custom_call.1} parent=0 // loop_footer_branch
    %8 = sbr.rel target = $region3
  $region8: #{tpu_custom_call.1} parent=0 // loop_exit
    _

</llo_original>
